<compile_context>
chip_gen: v5e
topology: v5e:2x2
jax: 0.10.0
libtpu: 0.0.40
codegen_flags: <defaults>
</compile_context>

<pallas_src>
import math

import jax
import jax.numpy as jnp
from jax import lax
from jax.experimental import pallas as pl
from jax.experimental.pallas import tpu as pltpu

_INV_SQRT2 = 1.0 / math.sqrt(2.0)


# ---------------------------------------------------------------------------
# Pallas kernel factory: one (batch, L-tile) block, all heads, all generators.
# ---------------------------------------------------------------------------
def _make_hyper_kernel(num_gens, M, F, O, matmul_dtype):
    def kernel(x_ref, *rest):
        w_refs = rest[:4 * num_gens]
        o_refs = rest[4 * num_gens:]

        x = x_ref[0]                                    # [L_tile, D], lane-dense
        if matmul_dtype is not None:
            x = x.astype(matmul_dtype)

        per_gen = [[] for _ in range(num_gens)]
        for m in range(M):                              # static, unrolled head loop
            xm = x[:, m * F:(m + 1) * F]                # [L_tile, F] static slice
            for g in range(num_gens):
                w1_ref, b1_ref, w2_ref, b2_ref = w_refs[4 * g:4 * g + 4]
                w1 = w1_ref[m]                          # [H, F]
                w2 = w2_ref[m]                          # [O, H]
                if matmul_dtype is not None:
                    w1 = w1.astype(matmul_dtype)
                    w2 = w2.astype(matmul_dtype)

                # fc1: contract last dim vs last dim (no .T relayout)
                h = lax.dot_general(xm, w1, (((1,), (1,)), ((), ())),
                                    preferred_element_type=jnp.float32)
                h = h + b1_ref[m]                       # [1, H] broadcast, f32

                # exact (erf) GELU, matching torch.nn.GELU() default
                h = 0.5 * h * (1.0 + lax.erf(h * _INV_SQRT2))

                if matmul_dtype is not None:
                    h = h.astype(matmul_dtype)
                o = lax.dot_general(h, w2, (((1,), (1,)), ((), ())),
                                    preferred_element_type=jnp.float32)
                o = o + b2_ref[m]                       # [1, O] broadcast, f32
                per_gen[g].append(o)

        # single lane-dense store per generator: [L_tile, M*O]
        for g in range(num_gens):
            packed = jnp.concatenate(per_gen[g], axis=-1)
            o_refs[g][0] = packed.astype(o_refs[g].dtype)

    return kernel


def _pick_l_tile(L, D, MO, num_gens, budget_bytes=8 << 20):
    """Largest L tile (divisor of L) whose double-buffered f32 x + output
    blocks fit a conservative VMEM budget (safe for v5e/v6e/v7x defaults)."""
    per_row = 4 * (D + num_gens * MO) * 2      # f32, double-buffered
    max_rows = max(8, budget_bytes // per_row)
    for cand in (1024, 512, 256, 128, 64, 32, 16, 8):
        if cand <= max_rows and cand <= L and L % cand == 0:
            return cand
    # TODO(synk): pad ragged L to a multiple of 8 instead of whole-seq fallback.
    return L


# ---------------------------------------------------------------------------
# Wrapper: fused HyperNetwork forward (W1 and W2 generators in one call).
# ---------------------------------------------------------------------------
def hypernetwork_forward(params, x, matmul_dtype=None):
    """HyperNetwork.forward: returns (W1, W2), each [B, M, L, O]."""
    tied = params["tied"]
    gens = [params["w1_gen"]] if tied else [params["w1_gen"], params["w2_gen"]]
    num_gens = len(gens)

    B, L, D = x.shape
    M, H, F = gens[0][0].shape
    O = gens[0][2].shape[1]
    assert D == M * F

    L_tile = _pick_l_tile(L, D, M * O, num_gens)
    grid = (B, L // L_tile)

    # x goes in as-is (lane-dense D last); weights/biases get constant
    # index_maps so Pallas keeps them resident in VMEM for the whole grid.
    in_specs = [pl.BlockSpec((1, L_tile, D), lambda b, l: (b, l, 0))]
    args = [x]
    for (w1, b1, w2, b2) in gens:
        in_specs += [
            pl.BlockSpec((M, H, F), lambda b, l: (0, 0, 0)),
            pl.BlockSpec((M, 1, H), lambda b, l: (0, 0, 0)),
            pl.BlockSpec((M, O, H), lambda b, l: (0, 0, 0)),
            pl.BlockSpec((M, 1, O), lambda b, l: (0, 0, 0)),
        ]
        args += [w1, b1.reshape(M, 1, H), w2, b2.reshape(M, 1, O)]

    out_shape = tuple(jax.ShapeDtypeStruct((B, L, M * O), x.dtype)
                      for _ in range(num_gens))
    out_specs = [pl.BlockSpec((1, L_tile, M * O), lambda b, l: (b, l, 0))
                 for _ in range(num_gens)]

    kernel = _make_hyper_kernel(num_gens, M, F, O, matmul_dtype)

    outs = pl.pallas_call(
        kernel,
        out_shape=out_shape,
        grid_spec=pltpu.PrefetchScalarGridSpec(
            num_scalar_prefetch=0,
            grid=grid,
            in_specs=in_specs,
            out_specs=out_specs),
        compiler_params=pltpu.CompilerParams(
            dimension_semantics=("parallel", "parallel")),
    )(*args)
    if not isinstance(outs, (tuple, list)):
        outs = (outs,)

    def unpack(o):   # packed [B, L, M*O] -> torch layout [B, M, L, O]
        return o.reshape(B, L, M, O).transpose(0, 2, 1, 3)

    W1 = unpack(outs[0])
    W2 = W1 if tied else unpack(outs[1])
    return W1, W2


# ---------------------------------------------------------------------------
# Deterministic parameter initialization (xavier_uniform, gain=sqrt(2)).
# ---------------------------------------------------------------------------
def _xavier_uniform(key, shape, gain):
    if len(shape) == 2:
        fan_in, fan_out = shape[1], shape[0]
    else:
        rf = 1
        for s in shape[2:]:
            rf *= s
        fan_in, fan_out = shape[1] * rf, shape[0] * rf
    a = gain * math.sqrt(6.0 / (fan_in + fan_out))
    return jax.random.uniform(key, shape, jnp.float32, -a, a)


def init_parallel_mlps_params(key, input_size, hidden_size, output_size,
                              num_mlps, keep_output_size=True):
    assert input_size % num_mlps == 0
    assert output_size % num_mlps == 0
    assert hidden_size % num_mlps == 0
    f = input_size // num_mlps
    h = hidden_size // num_mlps
    o = output_size if keep_output_size else output_size // num_mlps
    gain = math.sqrt(2.0)
    k1, k2, k3, k4 = jax.random.split(key, 4)
    w1 = _xavier_uniform(k1, (num_mlps, h, f), gain)
    b1 = _xavier_uniform(k2, (num_mlps, h), gain)
    w2 = _xavier_uniform(k3, (num_mlps, o, h), gain)
    b2 = _xavier_uniform(k4, (num_mlps, o), gain)
    return (w1, b1, w2, b2)


def init_hypernetwork_params(key, input_output_dim, hypernet_size,
                             tied=False, num_heads=1, keep_output_size=True):
    kw1, kw2 = jax.random.split(key, 2)
    w1_gen = init_parallel_mlps_params(
        kw1, input_output_dim, input_output_dim, hypernet_size,
        num_heads, keep_output_size)
    w2_gen = w1_gen if tied else init_parallel_mlps_params(
        kw2, input_output_dim, input_output_dim, hypernet_size,
        num_heads, keep_output_size)
    return {"w1_gen": w1_gen, "w2_gen": w2_gen, "tied": tied}


# ---------------------------------------------------------------------------
# Pure-JAX reference (mirrors the torch einsum code) for validation.
# ---------------------------------------------------------------------------
def _parallel_mlps_ref(x, params):
    w1, b1, w2, b2 = params
    B, L, D = x.shape
    M, H, F = w1.shape
    xh = x.reshape(B, L, M, F)
    h = jnp.einsum('blmf,mhf->bmlh', xh, w1) + b1[None, :, None, :]
    h = 0.5 * h * (1.0 + lax.erf(h / math.sqrt(2.0)))
    o = jnp.einsum('bmlh,mfh->bmlf', h, w2) + b2[None, :, None, :]
    return o


if __name__ == "__main__":
    # Small shapes consistent with the module: [B, L, D] input.
    B, L = 2, 8
    input_output_dim = 32
    hypernet_size = 64
    num_heads = 4

    key = jax.random.PRNGKey(0)
    k_params, k_x = jax.random.split(key)
    x = jax.random.normal(k_x, (B, L, input_output_dim), dtype=jnp.float32)

    # --- untied (fused two-generator kernel path) --------------------------
    params = init_hypernetwork_params(
        k_params, input_output_dim, hypernet_size,
        tied=False, num_heads=num_heads, keep_output_size=True)
    W1, W2 = hypernetwork_forward(params, x)
    W1 = jax.block_until_ready(W1)
    W2 = jax.block_until_ready(W2)

    W1_ref = _parallel_mlps_ref(x, params["w1_gen"])
    W2_ref = _parallel_mlps_ref(x, params["w2_gen"])
    assert W1.shape == (B, num_heads, L, hypernet_size)
    assert W2.shape == (B, num_heads, L, hypernet_size)
    assert jnp.allclose(W1, W1_ref, atol=1e-5, rtol=1e-5)
    assert jnp.allclose(W2, W2_ref, atol=1e-5, rtol=1e-5)

    # --- tied (single-generator kernel path) -------------------------------
    params_t = init_hypernetwork_params(
        k_params, input_output_dim, hypernet_size,
        tied=True, num_heads=num_heads, keep_output_size=True)
    W1t, W2t = hypernetwork_forward(params_t, x)
    W1t = jax.block_until_ready(W1t)
    W1t_ref = _parallel_mlps_ref(x, params_t["w1_gen"])
    assert jnp.allclose(W1t, W1t_ref, atol=1e-5, rtol=1e-5)
    assert jnp.allclose(W2t, W1t, atol=0.0)

    print("KERNEL_OK")
</pallas_src>

<mosaic_0001>
module attributes {stable_mosaic.version = 11 : i64} {
  func.func @kernel(%arg0: i32, %arg1: i32, %arg2: memref<1x8x32xf32, #tpu.memory_space<vmem>>, %arg3: memref<4x8x8xf32, #tpu.memory_space<vmem>>, %arg4: memref<4x1x8xf32, #tpu.memory_space<vmem>>, %arg5: memref<4x64x8xf32, #tpu.memory_space<vmem>>, %arg6: memref<4x1x64xf32, #tpu.memory_space<vmem>>, %arg7: memref<4x8x8xf32, #tpu.memory_space<vmem>>, %arg8: memref<4x1x8xf32, #tpu.memory_space<vmem>>, %arg9: memref<4x64x8xf32, #tpu.memory_space<vmem>>, %arg10: memref<4x1x64xf32, #tpu.memory_space<vmem>>, %arg11: memref<1x8x256xf32, #tpu.memory_space<vmem>>, %arg12: memref<1x8x256xf32, #tpu.memory_space<vmem>>) attributes {dimension_semantics = [#tpu.dimension_semantics<parallel>, #tpu.dimension_semantics<parallel>], iteration_bounds = array<i64: 2, 1>, scalar_prefetch = 0 : i64, scratch_operands = 0 : i64, tpu.core_type = #tpu.core_type<tc>, window_params = [{transform_indices = @transform_0, window_bounds = array<i64: 1, 8, 32>}, {pipeline_mode = #tpu.pipeline_mode<synchronous>, transform_indices = @transform_1, window_bounds = array<i64: 4, 8, 8>}, {pipeline_mode = #tpu.pipeline_mode<synchronous>, transform_indices = @transform_2, window_bounds = array<i64: 4, 1, 8>}, {pipeline_mode = #tpu.pipeline_mode<synchronous>, transform_indices = @transform_3, window_bounds = array<i64: 4, 64, 8>}, {pipeline_mode = #tpu.pipeline_mode<synchronous>, transform_indices = @transform_4, window_bounds = array<i64: 4, 1, 64>}, {pipeline_mode = #tpu.pipeline_mode<synchronous>, transform_indices = @transform_5, window_bounds = array<i64: 4, 8, 8>}, {pipeline_mode = #tpu.pipeline_mode<synchronous>, transform_indices = @transform_6, window_bounds = array<i64: 4, 1, 8>}, {pipeline_mode = #tpu.pipeline_mode<synchronous>, transform_indices = @transform_7, window_bounds = array<i64: 4, 64, 8>}, {pipeline_mode = #tpu.pipeline_mode<synchronous>, transform_indices = @transform_8, window_bounds = array<i64: 4, 1, 64>}, {transform_indices = @transform_9, window_bounds = array<i64: 1, 8, 256>}, {transform_indices = @transform_10, window_bounds = array<i64: 1, 8, 256>}]} {
    %c0 = arith.constant 0 : index
    %c0_0 = arith.constant 0 : index
    %c0_1 = arith.constant 0 : index
    %0 = vector.load %arg2[%c0, %c0_0, %c0_1] : memref<1x8x32xf32, #tpu.memory_space<vmem>>, vector<1x8x32xf32>
    %1 = vector.shape_cast %0 : vector<1x8x32xf32> to vector<8x32xf32>
    %2 = vector.extract_strided_slice %1 {offsets = [0, 0], sizes = [8, 8], strides = [1, 1]} : vector<8x32xf32> to vector<8x8xf32>
    %c0_2 = arith.constant 0 : index
    %c0_3 = arith.constant 0 : index
    %c0_4 = arith.constant 0 : index
    %3 = vector.load %arg3[%c0_2, %c0_3, %c0_4] : memref<4x8x8xf32, #tpu.memory_space<vmem>>, vector<1x8x8xf32>
    %4 = vector.shape_cast %3 : vector<1x8x8xf32> to vector<8x8xf32>
    %c0_5 = arith.constant 0 : index
    %c0_6 = arith.constant 0 : index
    %c0_7 = arith.constant 0 : index
    %5 = vector.load %arg5[%c0_5, %c0_6, %c0_7] : memref<4x64x8xf32, #tpu.memory_space<vmem>>, vector<1x64x8xf32>
    %6 = vector.shape_cast %5 : vector<1x64x8xf32> to vector<64x8xf32>
    %cst = arith.constant dense<0.000000e+00> : vector<8x8xf32>
    %7 = tpu.matmul %2, %4, %cst {dimension_numbers = #tpu.dot_dimension_numbers<[1], [1], [0], [0], [0, 0, 1, 0], [], []>} : vector<8x8xf32>, vector<8x8xf32>, vector<8x8xf32> -> vector<8x8xf32>
    %c0_8 = arith.constant 0 : index
    %c0_9 = arith.constant 0 : index
    %c0_10 = arith.constant 0 : index
    %8 = vector.load %arg4[%c0_8, %c0_9, %c0_10] : memref<4x1x8xf32, #tpu.memory_space<vmem>>, vector<1x1x8xf32>
    %9 = vector.shape_cast %8 : vector<1x1x8xf32> to vector<1x8xf32>
    %10 = vector.broadcast %9 : vector<1x8xf32> to vector<8x8xf32>
    %11 = arith.addf %7, %10 : vector<8x8xf32>
    %cst_11 = arith.constant 5.000000e-01 : f32
    %12 = vector.broadcast %cst_11 : f32 to vector<8x8xf32>
    %13 = arith.mulf %12, %11 : vector<8x8xf32>
    %cst_12 = arith.constant 0.707106769 : f32
    %14 = vector.broadcast %cst_12 : f32 to vector<8x8xf32>
    %15 = arith.mulf %11, %14 : vector<8x8xf32>
    %16 = math.erf %15 : vector<8x8xf32>
    %cst_13 = arith.constant 1.000000e+00 : f32
    %17 = vector.broadcast %cst_13 : f32 to vector<8x8xf32>
    %18 = arith.addf %17, %16 : vector<8x8xf32>
    %19 = arith.mulf %13, %18 : vector<8x8xf32>
    %cst_14 = arith.constant dense<0.000000e+00> : vector<8x64xf32>
    %20 = tpu.matmul %19, %6, %cst_14 {dimension_numbers = #tpu.dot_dimension_numbers<[1], [1], [0], [0], [0, 0, 1, 0], [], []>} : vector<8x8xf32>, vector<64x8xf32>, vector<8x64xf32> -> vector<8x64xf32>
    %c0_15 = arith.constant 0 : index
    %c0_16 = arith.constant 0 : index
    %c0_17 = arith.constant 0 : index
    %21 = vector.load %arg6[%c0_15, %c0_16, %c0_17] : memref<4x1x64xf32, #tpu.memory_space<vmem>>, vector<1x1x64xf32>
    %22 = vector.shape_cast %21 : vector<1x1x64xf32> to vector<1x64xf32>
    %23 = vector.broadcast %22 : vector<1x64xf32> to vector<8x64xf32>
    %24 = arith.addf %20, %23 : vector<8x64xf32>
    %c0_18 = arith.constant 0 : index
    %c0_19 = arith.constant 0 : index
    %c0_20 = arith.constant 0 : index
    %25 = vector.load %arg7[%c0_18, %c0_19, %c0_20] : memref<4x8x8xf32, #tpu.memory_space<vmem>>, vector<1x8x8xf32>
    %26 = vector.shape_cast %25 : vector<1x8x8xf32> to vector<8x8xf32>
    %c0_21 = arith.constant 0 : index
    %c0_22 = arith.constant 0 : index
    %c0_23 = arith.constant 0 : index
    %27 = vector.load %arg9[%c0_21, %c0_22, %c0_23] : memref<4x64x8xf32, #tpu.memory_space<vmem>>, vector<1x64x8xf32>
    %28 = vector.shape_cast %27 : vector<1x64x8xf32> to vector<64x8xf32>
    %cst_24 = arith.constant dense<0.000000e+00> : vector<8x8xf32>
    %29 = tpu.matmul %2, %26, %cst_24 {dimension_numbers = #tpu.dot_dimension_numbers<[1], [1], [0], [0], [0, 0, 1, 0], [], []>} : vector<8x8xf32>, vector<8x8xf32>, vector<8x8xf32> -> vector<8x8xf32>
    %c0_25 = arith.constant 0 : index
    %c0_26 = arith.constant 0 : index
    %c0_27 = arith.constant 0 : index
    %30 = vector.load %arg8[%c0_25, %c0_26, %c0_27] : memref<4x1x8xf32, #tpu.memory_space<vmem>>, vector<1x1x8xf32>
    %31 = vector.shape_cast %30 : vector<1x1x8xf32> to vector<1x8xf32>
    %32 = vector.broadcast %31 : vector<1x8xf32> to vector<8x8xf32>
    %33 = arith.addf %29, %32 : vector<8x8xf32>
    %cst_28 = arith.constant 5.000000e-01 : f32
    %34 = vector.broadcast %cst_28 : f32 to vector<8x8xf32>
    %35 = arith.mulf %34, %33 : vector<8x8xf32>
    %cst_29 = arith.constant 0.707106769 : f32
    %36 = vector.broadcast %cst_29 : f32 to vector<8x8xf32>
    %37 = arith.mulf %33, %36 : vector<8x8xf32>
    %38 = math.erf %37 : vector<8x8xf32>
    %cst_30 = arith.constant 1.000000e+00 : f32
    %39 = vector.broadcast %cst_30 : f32 to vector<8x8xf32>
    %40 = arith.addf %39, %38 : vector<8x8xf32>
    %41 = arith.mulf %35, %40 : vector<8x8xf32>
    %cst_31 = arith.constant dense<0.000000e+00> : vector<8x64xf32>
    %42 = tpu.matmul %41, %28, %cst_31 {dimension_numbers = #tpu.dot_dimension_numbers<[1], [1], [0], [0], [0, 0, 1, 0], [], []>} : vector<8x8xf32>, vector<64x8xf32>, vector<8x64xf32> -> vector<8x64xf32>
    %c0_32 = arith.constant 0 : index
    %c0_33 = arith.constant 0 : index
    %c0_34 = arith.constant 0 : index
    %43 = vector.load %arg10[%c0_32, %c0_33, %c0_34] : memref<4x1x64xf32, #tpu.memory_space<vmem>>, vector<1x1x64xf32>
    %44 = vector.shape_cast %43 : vector<1x1x64xf32> to vector<1x64xf32>
    %45 = vector.broadcast %44 : vector<1x64xf32> to vector<8x64xf32>
    %46 = arith.addf %42, %45 : vector<8x64xf32>
    %47 = vector.extract_strided_slice %1 {offsets = [0, 8], sizes = [8, 8], strides = [1, 1]} : vector<8x32xf32> to vector<8x8xf32>
    %c1 = arith.constant 1 : index
    %c0_35 = arith.constant 0 : index
    %c0_36 = arith.constant 0 : index
    %48 = vector.load %arg3[%c1, %c0_35, %c0_36] : memref<4x8x8xf32, #tpu.memory_space<vmem>>, vector<1x8x8xf32>
    %49 = vector.shape_cast %48 : vector<1x8x8xf32> to vector<8x8xf32>
    %c1_37 = arith.constant 1 : index
    %c0_38 = arith.constant 0 : index
    %c0_39 = arith.constant 0 : index
    %50 = vector.load %arg5[%c1_37, %c0_38, %c0_39] : memref<4x64x8xf32, #tpu.memory_space<vmem>>, vector<1x64x8xf32>
    %51 = vector.shape_cast %50 : vector<1x64x8xf32> to vector<64x8xf32>
    %cst_40 = arith.constant dense<0.000000e+00> : vector<8x8xf32>
    %52 = tpu.matmul %47, %49, %cst_40 {dimension_numbers = #tpu.dot_dimension_numbers<[1], [1], [0], [0], [0, 0, 1, 0], [], []>} : vector<8x8xf32>, vector<8x8xf32>, vector<8x8xf32> -> vector<8x8xf32>
    %c1_41 = arith.constant 1 : index
    %c0_42 = arith.constant 0 : index
    %c0_43 = arith.constant 0 : index
    %53 = vector.load %arg4[%c1_41, %c0_42, %c0_43] : memref<4x1x8xf32, #tpu.memory_space<vmem>>, vector<1x1x8xf32>
    %54 = vector.shape_cast %53 : vector<1x1x8xf32> to vector<1x8xf32>
    %55 = vector.broadcast %54 : vector<1x8xf32> to vector<8x8xf32>
    %56 = arith.addf %52, %55 : vector<8x8xf32>
    %cst_44 = arith.constant 5.000000e-01 : f32
    %57 = vector.broadcast %cst_44 : f32 to vector<8x8xf32>
    %58 = arith.mulf %57, %56 : vector<8x8xf32>
    %cst_45 = arith.constant 0.707106769 : f32
    %59 = vector.broadcast %cst_45 : f32 to vector<8x8xf32>
    %60 = arith.mulf %56, %59 : vector<8x8xf32>
    %61 = math.erf %60 : vector<8x8xf32>
    %cst_46 = arith.constant 1.000000e+00 : f32
    %62 = vector.broadcast %cst_46 : f32 to vector<8x8xf32>
    %63 = arith.addf %62, %61 : vector<8x8xf32>
    %64 = arith.mulf %58, %63 : vector<8x8xf32>
    %cst_47 = arith.constant dense<0.000000e+00> : vector<8x64xf32>
    %65 = tpu.matmul %64, %51, %cst_47 {dimension_numbers = #tpu.dot_dimension_numbers<[1], [1], [0], [0], [0, 0, 1, 0], [], []>} : vector<8x8xf32>, vector<64x8xf32>, vector<8x64xf32> -> vector<8x64xf32>
    %c1_48 = arith.constant 1 : index
    %c0_49 = arith.constant 0 : index
    %c0_50 = arith.constant 0 : index
    %66 = vector.load %arg6[%c1_48, %c0_49, %c0_50] : memref<4x1x64xf32, #tpu.memory_space<vmem>>, vector<1x1x64xf32>
    %67 = vector.shape_cast %66 : vector<1x1x64xf32> to vector<1x64xf32>
    %68 = vector.broadcast %67 : vector<1x64xf32> to vector<8x64xf32>
    %69 = arith.addf %65, %68 : vector<8x64xf32>
    %c1_51 = arith.constant 1 : index
    %c0_52 = arith.constant 0 : index
    %c0_53 = arith.constant 0 : index
    %70 = vector.load %arg7[%c1_51, %c0_52, %c0_53] : memref<4x8x8xf32, #tpu.memory_space<vmem>>, vector<1x8x8xf32>
    %71 = vector.shape_cast %70 : vector<1x8x8xf32> to vector<8x8xf32>
    %c1_54 = arith.constant 1 : index
    %c0_55 = arith.constant 0 : index
    %c0_56 = arith.constant 0 : index
    %72 = vector.load %arg9[%c1_54, %c0_55, %c0_56] : memref<4x64x8xf32, #tpu.memory_space<vmem>>, vector<1x64x8xf32>
    %73 = vector.shape_cast %72 : vector<1x64x8xf32> to vector<64x8xf32>
    %cst_57 = arith.constant dense<0.000000e+00> : vector<8x8xf32>
    %74 = tpu.matmul %47, %71, %cst_57 {dimension_numbers = #tpu.dot_dimension_numbers<[1], [1], [0], [0], [0, 0, 1, 0], [], []>} : vector<8x8xf32>, vector<8x8xf32>, vector<8x8xf32> -> vector<8x8xf32>
    %c1_58 = arith.constant 1 : index
    %c0_59 = arith.constant 0 : index
    %c0_60 = arith.constant 0 : index
    %75 = vector.load %arg8[%c1_58, %c0_59, %c0_60] : memref<4x1x8xf32, #tpu.memory_space<vmem>>, vector<1x1x8xf32>
    %76 = vector.shape_cast %75 : vector<1x1x8xf32> to vector<1x8xf32>
    %77 = vector.broadcast %76 : vector<1x8xf32> to vector<8x8xf32>
    %78 = arith.addf %74, %77 : vector<8x8xf32>
    %cst_61 = arith.constant 5.000000e-01 : f32
    %79 = vector.broadcast %cst_61 : f32 to vector<8x8xf32>
    %80 = arith.mulf %79, %78 : vector<8x8xf32>
    %cst_62 = arith.constant 0.707106769 : f32
    %81 = vector.broadcast %cst_62 : f32 to vector<8x8xf32>
    %82 = arith.mulf %78, %81 : vector<8x8xf32>
    %83 = math.erf %82 : vector<8x8xf32>
    %cst_63 = arith.constant 1.000000e+00 : f32
    %84 = vector.broadcast %cst_63 : f32 to vector<8x8xf32>
    %85 = arith.addf %84, %83 : vector<8x8xf32>
    %86 = arith.mulf %80, %85 : vector<8x8xf32>
    %cst_64 = arith.constant dense<0.000000e+00> : vector<8x64xf32>
    %87 = tpu.matmul %86, %73, %cst_64 {dimension_numbers = #tpu.dot_dimension_numbers<[1], [1], [0], [0], [0, 0, 1, 0], [], []>} : vector<8x8xf32>, vector<64x8xf32>, vector<8x64xf32> -> vector<8x64xf32>
    %c1_65 = arith.constant 1 : index
    %c0_66 = arith.constant 0 : index
    %c0_67 = arith.constant 0 : index
    %88 = vector.load %arg10[%c1_65, %c0_66, %c0_67] : memref<4x1x64xf32, #tpu.memory_space<vmem>>, vector<1x1x64xf32>
    %89 = vector.shape_cast %88 : vector<1x1x64xf32> to vector<1x64xf32>
    %90 = vector.broadcast %89 : vector<1x64xf32> to vector<8x64xf32>
    %91 = arith.addf %87, %90 : vector<8x64xf32>
    %92 = vector.extract_strided_slice %1 {offsets = [0, 16], sizes = [8, 8], strides = [1, 1]} : vector<8x32xf32> to vector<8x8xf32>
    %c2 = arith.constant 2 : index
    %c0_68 = arith.constant 0 : index
    %c0_69 = arith.constant 0 : index
    %93 = vector.load %arg3[%c2, %c0_68, %c0_69] : memref<4x8x8xf32, #tpu.memory_space<vmem>>, vector<1x8x8xf32>
    %94 = vector.shape_cast %93 : vector<1x8x8xf32> to vector<8x8xf32>
    %c2_70 = arith.constant 2 : index
    %c0_71 = arith.constant 0 : index
    %c0_72 = arith.constant 0 : index
    %95 = vector.load %arg5[%c2_70, %c0_71, %c0_72] : memref<4x64x8xf32, #tpu.memory_space<vmem>>, vector<1x64x8xf32>
    %96 = vector.shape_cast %95 : vector<1x64x8xf32> to vector<64x8xf32>
    %cst_73 = arith.constant dense<0.000000e+00> : vector<8x8xf32>
    %97 = tpu.matmul %92, %94, %cst_73 {dimension_numbers = #tpu.dot_dimension_numbers<[1], [1], [0], [0], [0, 0, 1, 0], [], []>} : vector<8x8xf32>, vector<8x8xf32>, vector<8x8xf32> -> vector<8x8xf32>
    %c2_74 = arith.constant 2 : index
    %c0_75 = arith.constant 0 : index
    %c0_76 = arith.constant 0 : index
    %98 = vector.load %arg4[%c2_74, %c0_75, %c0_76] : memref<4x1x8xf32, #tpu.memory_space<vmem>>, vector<1x1x8xf32>
    %99 = vector.shape_cast %98 : vector<1x1x8xf32> to vector<1x8xf32>
    %100 = vector.broadcast %99 : vector<1x8xf32> to vector<8x8xf32>
    %101 = arith.addf %97, %100 : vector<8x8xf32>
    %cst_77 = arith.constant 5.000000e-01 : f32
    %102 = vector.broadcast %cst_77 : f32 to vector<8x8xf32>
    %103 = arith.mulf %102, %101 : vector<8x8xf32>
    %cst_78 = arith.constant 0.707106769 : f32
    %104 = vector.broadcast %cst_78 : f32 to vector<8x8xf32>
    %105 = arith.mulf %101, %104 : vector<8x8xf32>
    %106 = math.erf %105 : vector<8x8xf32>
    %cst_79 = arith.constant 1.000000e+00 : f32
    %107 = vector.broadcast %cst_79 : f32 to vector<8x8xf32>
    %108 = arith.addf %107, %106 : vector<8x8xf32>
    %109 = arith.mulf %103, %108 : vector<8x8xf32>
    %cst_80 = arith.constant dense<0.000000e+00> : vector<8x64xf32>
    %110 = tpu.matmul %109, %96, %cst_80 {dimension_numbers = #tpu.dot_dimension_numbers<[1], [1], [0], [0], [0, 0, 1, 0], [], []>} : vector<8x8xf32>, vector<64x8xf32>, vector<8x64xf32> -> vector<8x64xf32>
    %c2_81 = arith.constant 2 : index
    %c0_82 = arith.constant 0 : index
    %c0_83 = arith.constant 0 : index
    %111 = vector.load %arg6[%c2_81, %c0_82, %c0_83] : memref<4x1x64xf32, #tpu.memory_space<vmem>>, vector<1x1x64xf32>
    %112 = vector.shape_cast %111 : vector<1x1x64xf32> to vector<1x64xf32>
    %113 = vector.broadcast %112 : vector<1x64xf32> to vector<8x64xf32>
    %114 = arith.addf %110, %113 : vector<8x64xf32>
    %c2_84 = arith.constant 2 : index
    %c0_85 = arith.constant 0 : index
    %c0_86 = arith.constant 0 : index
    %115 = vector.load %arg7[%c2_84, %c0_85, %c0_86] : memref<4x8x8xf32, #tpu.memory_space<vmem>>, vector<1x8x8xf32>
    %116 = vector.shape_cast %115 : vector<1x8x8xf32> to vector<8x8xf32>
    %c2_87 = arith.constant 2 : index
    %c0_88 = arith.constant 0 : index
    %c0_89 = arith.constant 0 : index
    %117 = vector.load %arg9[%c2_87, %c0_88, %c0_89] : memref<4x64x8xf32, #tpu.memory_space<vmem>>, vector<1x64x8xf32>
    %118 = vector.shape_cast %117 : vector<1x64x8xf32> to vector<64x8xf32>
    %cst_90 = arith.constant dense<0.000000e+00> : vector<8x8xf32>
    %119 = tpu.matmul %92, %116, %cst_90 {dimension_numbers = #tpu.dot_dimension_numbers<[1], [1], [0], [0], [0, 0, 1, 0], [], []>} : vector<8x8xf32>, vector<8x8xf32>, vector<8x8xf32> -> vector<8x8xf32>
    %c2_91 = arith.constant 2 : index
    %c0_92 = arith.constant 0 : index
    %c0_93 = arith.constant 0 : index
    %120 = vector.load %arg8[%c2_91, %c0_92, %c0_93] : memref<4x1x8xf32, #tpu.memory_space<vmem>>, vector<1x1x8xf32>
    %121 = vector.shape_cast %120 : vector<1x1x8xf32> to vector<1x8xf32>
    %122 = vector.broadcast %121 : vector<1x8xf32> to vector<8x8xf32>
    %123 = arith.addf %119, %122 : vector<8x8xf32>
    %cst_94 = arith.constant 5.000000e-01 : f32
    %124 = vector.broadcast %cst_94 : f32 to vector<8x8xf32>
    %125 = arith.mulf %124, %123 : vector<8x8xf32>
    %cst_95 = arith.constant 0.707106769 : f32
    %126 = vector.broadcast %cst_95 : f32 to vector<8x8xf32>
    %127 = arith.mulf %123, %126 : vector<8x8xf32>
    %128 = math.erf %127 : vector<8x8xf32>
    %cst_96 = arith.constant 1.000000e+00 : f32
    %129 = vector.broadcast %cst_96 : f32 to vector<8x8xf32>
    %130 = arith.addf %129, %128 : vector<8x8xf32>
    %131 = arith.mulf %125, %130 : vector<8x8xf32>
    %cst_97 = arith.constant dense<0.000000e+00> : vector<8x64xf32>
    %132 = tpu.matmul %131, %118, %cst_97 {dimension_numbers = #tpu.dot_dimension_numbers<[1], [1], [0], [0], [0, 0, 1, 0], [], []>} : vector<8x8xf32>, vector<64x8xf32>, vector<8x64xf32> -> vector<8x64xf32>
    %c2_98 = arith.constant 2 : index
    %c0_99 = arith.constant 0 : index
    %c0_100 = arith.constant 0 : index
    %133 = vector.load %arg10[%c2_98, %c0_99, %c0_100] : memref<4x1x64xf32, #tpu.memory_space<vmem>>, vector<1x1x64xf32>
    %134 = vector.shape_cast %133 : vector<1x1x64xf32> to vector<1x64xf32>
    %135 = vector.broadcast %134 : vector<1x64xf32> to vector<8x64xf32>
    %136 = arith.addf %132, %135 : vector<8x64xf32>
    %137 = vector.extract_strided_slice %1 {offsets = [0, 24], sizes = [8, 8], strides = [1, 1]} : vector<8x32xf32> to vector<8x8xf32>
    %c3 = arith.constant 3 : index
    %c0_101 = arith.constant 0 : index
    %c0_102 = arith.constant 0 : index
    %138 = vector.load %arg3[%c3, %c0_101, %c0_102] : memref<4x8x8xf32, #tpu.memory_space<vmem>>, vector<1x8x8xf32>
    %139 = vector.shape_cast %138 : vector<1x8x8xf32> to vector<8x8xf32>
    %c3_103 = arith.constant 3 : index
    %c0_104 = arith.constant 0 : index
    %c0_105 = arith.constant 0 : index
    %140 = vector.load %arg5[%c3_103, %c0_104, %c0_105] : memref<4x64x8xf32, #tpu.memory_space<vmem>>, vector<1x64x8xf32>
    %141 = vector.shape_cast %140 : vector<1x64x8xf32> to vector<64x8xf32>
    %cst_106 = arith.constant dense<0.000000e+00> : vector<8x8xf32>
    %142 = tpu.matmul %137, %139, %cst_106 {dimension_numbers = #tpu.dot_dimension_numbers<[1], [1], [0], [0], [0, 0, 1, 0], [], []>} : vector<8x8xf32>, vector<8x8xf32>, vector<8x8xf32> -> vector<8x8xf32>
    %c3_107 = arith.constant 3 : index
    %c0_108 = arith.constant 0 : index
    %c0_109 = arith.constant 0 : index
    %143 = vector.load %arg4[%c3_107, %c0_108, %c0_109] : memref<4x1x8xf32, #tpu.memory_space<vmem>>, vector<1x1x8xf32>
    %144 = vector.shape_cast %143 : vector<1x1x8xf32> to vector<1x8xf32>
    %145 = vector.broadcast %144 : vector<1x8xf32> to vector<8x8xf32>
    %146 = arith.addf %142, %145 : vector<8x8xf32>
    %cst_110 = arith.constant 5.000000e-01 : f32
    %147 = vector.broadcast %cst_110 : f32 to vector<8x8xf32>
    %148 = arith.mulf %147, %146 : vector<8x8xf32>
    %cst_111 = arith.constant 0.707106769 : f32
    %149 = vector.broadcast %cst_111 : f32 to vector<8x8xf32>
    %150 = arith.mulf %146, %149 : vector<8x8xf32>
    %151 = math.erf %150 : vector<8x8xf32>
    %cst_112 = arith.constant 1.000000e+00 : f32
    %152 = vector.broadcast %cst_112 : f32 to vector<8x8xf32>
    %153 = arith.addf %152, %151 : vector<8x8xf32>
    %154 = arith.mulf %148, %153 : vector<8x8xf32>
    %cst_113 = arith.constant dense<0.000000e+00> : vector<8x64xf32>
    %155 = tpu.matmul %154, %141, %cst_113 {dimension_numbers = #tpu.dot_dimension_numbers<[1], [1], [0], [0], [0, 0, 1, 0], [], []>} : vector<8x8xf32>, vector<64x8xf32>, vector<8x64xf32> -> vector<8x64xf32>
    %c3_114 = arith.constant 3 : index
    %c0_115 = arith.constant 0 : index
    %c0_116 = arith.constant 0 : index
    %156 = vector.load %arg6[%c3_114, %c0_115, %c0_116] : memref<4x1x64xf32, #tpu.memory_space<vmem>>, vector<1x1x64xf32>
    %157 = vector.shape_cast %156 : vector<1x1x64xf32> to vector<1x64xf32>
    %158 = vector.broadcast %157 : vector<1x64xf32> to vector<8x64xf32>
    %159 = arith.addf %155, %158 : vector<8x64xf32>
    %c3_117 = arith.constant 3 : index
    %c0_118 = arith.constant 0 : index
    %c0_119 = arith.constant 0 : index
    %160 = vector.load %arg7[%c3_117, %c0_118, %c0_119] : memref<4x8x8xf32, #tpu.memory_space<vmem>>, vector<1x8x8xf32>
    %161 = vector.shape_cast %160 : vector<1x8x8xf32> to vector<8x8xf32>
    %c3_120 = arith.constant 3 : index
    %c0_121 = arith.constant 0 : index
    %c0_122 = arith.constant 0 : index
    %162 = vector.load %arg9[%c3_120, %c0_121, %c0_122] : memref<4x64x8xf32, #tpu.memory_space<vmem>>, vector<1x64x8xf32>
    %163 = vector.shape_cast %162 : vector<1x64x8xf32> to vector<64x8xf32>
    %cst_123 = arith.constant dense<0.000000e+00> : vector<8x8xf32>
    %164 = tpu.matmul %137, %161, %cst_123 {dimension_numbers = #tpu.dot_dimension_numbers<[1], [1], [0], [0], [0, 0, 1, 0], [], []>} : vector<8x8xf32>, vector<8x8xf32>, vector<8x8xf32> -> vector<8x8xf32>
    %c3_124 = arith.constant 3 : index
    %c0_125 = arith.constant 0 : index
    %c0_126 = arith.constant 0 : index
    %165 = vector.load %arg8[%c3_124, %c0_125, %c0_126] : memref<4x1x8xf32, #tpu.memory_space<vmem>>, vector<1x1x8xf32>
    %166 = vector.shape_cast %165 : vector<1x1x8xf32> to vector<1x8xf32>
    %167 = vector.broadcast %166 : vector<1x8xf32> to vector<8x8xf32>
    %168 = arith.addf %164, %167 : vector<8x8xf32>
    %cst_127 = arith.constant 5.000000e-01 : f32
    %169 = vector.broadcast %cst_127 : f32 to vector<8x8xf32>
    %170 = arith.mulf %169, %168 : vector<8x8xf32>
    %cst_128 = arith.constant 0.707106769 : f32
    %171 = vector.broadcast %cst_128 : f32 to vector<8x8xf32>
    %172 = arith.mulf %168, %171 : vector<8x8xf32>
    %173 = math.erf %172 : vector<8x8xf32>
    %cst_129 = arith.constant 1.000000e+00 : f32
    %174 = vector.broadcast %cst_129 : f32 to vector<8x8xf32>
    %175 = arith.addf %174, %173 : vector<8x8xf32>
    %176 = arith.mulf %170, %175 : vector<8x8xf32>
    %cst_130 = arith.constant dense<0.000000e+00> : vector<8x64xf32>
    %177 = tpu.matmul %176, %163, %cst_130 {dimension_numbers = #tpu.dot_dimension_numbers<[1], [1], [0], [0], [0, 0, 1, 0], [], []>} : vector<8x8xf32>, vector<64x8xf32>, vector<8x64xf32> -> vector<8x64xf32>
    %c3_131 = arith.constant 3 : index
    %c0_132 = arith.constant 0 : index
    %c0_133 = arith.constant 0 : index
    %178 = vector.load %arg10[%c3_131, %c0_132, %c0_133] : memref<4x1x64xf32, #tpu.memory_space<vmem>>, vector<1x1x64xf32>
    %179 = vector.shape_cast %178 : vector<1x1x64xf32> to vector<1x64xf32>
    %180 = vector.broadcast %179 : vector<1x64xf32> to vector<8x64xf32>
    %181 = arith.addf %177, %180 : vector<8x64xf32>
    %182 = tpu.concatenate %24, %69, %114, %159 in 1 : vector<8x64xf32>, vector<8x64xf32>, vector<8x64xf32>, vector<8x64xf32> -> vector<8x256xf32>
    %c0_134 = arith.constant 0 : index
    %c0_135 = arith.constant 0 : index
    %c0_136 = arith.constant 0 : index
    %183 = vector.load %arg11[%c0_134, %c0_135, %c0_136] : memref<1x8x256xf32, #tpu.memory_space<vmem>>, vector<1x8x256xf32>
    %184 = vector.shape_cast %183 : vector<1x8x256xf32> to vector<8x256xf32>
    %185 = vector.shape_cast %182 : vector<8x256xf32> to vector<1x8x256xf32>
    tpu.vector_store %arg11[%c0_134, %c0_135, %c0_136], %185 {strides = array<i32>} : memref<1x8x256xf32, #tpu.memory_space<vmem>>, vector<1x8x256xf32>,
    %186 = tpu.concatenate %46, %91, %136, %181 in 1 : vector<8x64xf32>, vector<8x64xf32>, vector<8x64xf32>, vector<8x64xf32> -> vector<8x256xf32>
    %c0_137 = arith.constant 0 : index
    %c0_138 = arith.constant 0 : index
    %c0_139 = arith.constant 0 : index
    %187 = vector.load %arg12[%c0_137, %c0_138, %c0_139] : memref<1x8x256xf32, #tpu.memory_space<vmem>>, vector<1x8x256xf32>
    %188 = vector.shape_cast %187 : vector<1x8x256xf32> to vector<8x256xf32>
    %189 = vector.shape_cast %186 : vector<8x256xf32> to vector<1x8x256xf32>
    tpu.vector_store %arg12[%c0_137, %c0_138, %c0_139], %189 {strides = array<i32>} : memref<1x8x256xf32, #tpu.memory_space<vmem>>, vector<1x8x256xf32>,
    return
  }
  func.func @transform_0(%arg0: i32, %arg1: i32) -> (i32, i32, i32) {
    %c0_i32 = arith.constant 0 : i32
    %c0_i32_0 = arith.constant 0 : i32
    return %arg0, %arg1, %c0_i32 : i32, i32, i32
  }
  func.func @transform_1(%arg0: i32, %arg1: i32) -> (i32, i32, i32) {
    %c0_i32 = arith.constant 0 : i32
    %c0_i32_0 = arith.constant 0 : i32
    %c0_i32_1 = arith.constant 0 : i32
    %c0_i32_2 = arith.constant 0 : i32
    return %c0_i32, %c0_i32_0, %c0_i32_1 : i32, i32, i32
  }
  func.func @transform_2(%arg0: i32, %arg1: i32) -> (i32, i32, i32) {
    %c0_i32 = arith.constant 0 : i32
    %c0_i32_0 = arith.constant 0 : i32
    %c0_i32_1 = arith.constant 0 : i32
    %c0_i32_2 = arith.constant 0 : i32
    return %c0_i32, %c0_i32_0, %c0_i32_1 : i32, i32, i32
  }
  func.func @transform_3(%arg0: i32, %arg1: i32) -> (i32, i32, i32) {
    %c0_i32 = arith.constant 0 : i32
    %c0_i32_0 = arith.constant 0 : i32
    %c0_i32_1 = arith.constant 0 : i32
    %c0_i32_2 = arith.constant 0 : i32
    return %c0_i32, %c0_i32_0, %c0_i32_1 : i32, i32, i32
  }
  func.func @transform_4(%arg0: i32, %arg1: i32) -> (i32, i32, i32) {
    %c0_i32 = arith.constant 0 : i32
    %c0_i32_0 = arith.constant 0 : i32
    %c0_i32_1 = arith.constant 0 : i32
    %c0_i32_2 = arith.constant 0 : i32
    return %c0_i32, %c0_i32_0, %c0_i32_1 : i32, i32, i32
  }
  func.func @transform_5(%arg0: i32, %arg1: i32) -> (i32, i32, i32) {
    %c0_i32 = arith.constant 0 : i32
    %c0_i32_0 = arith.constant 0 : i32
    %c0_i32_1 = arith.constant 0 : i32
    %c0_i32_2 = arith.constant 0 : i32
    return %c0_i32, %c0_i32_0, %c0_i32_1 : i32, i32, i32
  }
  func.func @transform_6(%arg0: i32, %arg1: i32) -> (i32, i32, i32) {
    %c0_i32 = arith.constant 0 : i32
    %c0_i32_0 = arith.constant 0 : i32
    %c0_i32_1 = arith.constant 0 : i32
    %c0_i32_2 = arith.constant 0 : i32
    return %c0_i32, %c0_i32_0, %c0_i32_1 : i32, i32, i32
  }
  func.func @transform_7(%arg0: i32, %arg1: i32) -> (i32, i32, i32) {
    %c0_i32 = arith.constant 0 : i32
    %c0_i32_0 = arith.constant 0 : i32
    %c0_i32_1 = arith.constant 0 : i32
    %c0_i32_2 = arith.constant 0 : i32
    return %c0_i32, %c0_i32_0, %c0_i32_1 : i32, i32, i32
  }
  func.func @transform_8(%arg0: i32, %arg1: i32) -> (i32, i32, i32) {
    %c0_i32 = arith.constant 0 : i32
    %c0_i32_0 = arith.constant 0 : i32
    %c0_i32_1 = arith.constant 0 : i32
    %c0_i32_2 = arith.constant 0 : i32
    return %c0_i32, %c0_i32_0, %c0_i32_1 : i32, i32, i32
  }
  func.func @transform_9(%arg0: i32, %arg1: i32) -> (i32, i32, i32) {
    %c0_i32 = arith.constant 0 : i32
    %c0_i32_0 = arith.constant 0 : i32
    return %arg0, %arg1, %c0_i32 : i32, i32, i32
  }
  func.func @transform_10(%arg0: i32, %arg1: i32) -> (i32, i32, i32) {
    %c0_i32 = arith.constant 0 : i32
    %c0_i32_0 = arith.constant 0 : i32
    return %arg0, %arg1, %c0_i32 : i32, i32, i32
  }
}

</mosaic_0001>

<llo_original>
// kernel: tpu_custom_call.1
$region0: #{tpu_custom_call.1}
  #allocation0 [shape = 'u32[]', space=smem, size = 0x4, offset = 0x4, fixed_abs, tag = 'smem constant byte address 0x4 - core index']
  #allocation1 [shape = 'u32[72,128]{1,0:T(1,128)}', space=vmem, size = 0x9000, scoped, tag = 'internal scratch']
  %s0 = inlined_call_operand.vmem [shape: f32[2,8,32], index: 0, kind: input, shape index: {}]
  %s1 = inlined_call_operand.vmem [shape: f32[4,8,8], index: 1, kind: input, shape index: {}]
  %s2 = inlined_call_operand.vmem [shape: f32[4,1,8], index: 2, kind: input, shape index: {}]
  %s3 = inlined_call_operand.vmem [shape: f32[4,64,8], index: 3, kind: input, shape index: {}]
  %s4 = inlined_call_operand.vmem [shape: f32[4,1,64], index: 4, kind: input, shape index: {}]
  %s5 = inlined_call_operand.vmem [shape: f32[4,8,8], index: 5, kind: input, shape index: {}]
  %s6 = inlined_call_operand.vmem [shape: f32[4,1,8], index: 6, kind: input, shape index: {}]
  %s7 = inlined_call_operand.vmem [shape: f32[4,64,8], index: 7, kind: input, shape index: {}]
  %s8 = inlined_call_operand.vmem [shape: f32[4,1,64], index: 8, kind: input, shape index: {}]
  %s9 = inlined_call_operand.hbm [shape: f32[2,8,256], index: 9, kind: output, shape index: {0}]
  %s10 = inlined_call_operand.hbm [shape: f32[2,8,256], index: 10, kind: output, shape index: {1}]
  %11 = xla_tuple %s9, %s10
  %s12 = sld [smem:[#allocation0]]
  $region77: #{tpu_custom_call.1} parent=0
    _
  %s14 = ssub.s32 1, %s12
  %s15 = scalar_select 0, %s14, %s12
  $region1: #{tpu_custom_call.1} parent=0
    #allocation2 [shape = 'u8[16384]{0}', space=vmem, size = 0x4000, scoped, tag = 'output window, operand 0']
    #allocation3 [shape = 's32[2]{0}', space=sflag, size = 0x8, scoped, tag = 'scoped memory for tpu_custom_call.1']
    #allocation4 [shape = 'u8[16384]{0}', space=vmem, size = 0x4000, scoped, tag = 'output window, operand 1']
    #allocation5 [shape = 's32[2]{0}', space=sflag, size = 0x8, scoped, tag = 'scoped memory for tpu_custom_call.1']
    %16 = vsyncpa [#allocation3], 0
    %s17 = scalar_lea.sflag [#allocation3], 1
    %18 = vsyncpa %s17, 0
    %19 = vsyncpa [#allocation5], 0
    %s20 = scalar_lea.sflag [#allocation5], 1
    %21 = vsyncpa %s20, 0
    loop: start=0, step=1, limit=4
    $region2: #{tpu_custom_call.1} parent=1 // loop_pre_header
      _
    $region3: #{tpu_custom_call.1} parent=1 // loop_header
      %s23 = sphi 0, %s27
      %p24 = scmp.ge.s32.totalorder %s23, 4
      %s30 = sphi 0, %s42
      %s31 = sphi 0, %s38
      %s32 = sphi 0, %s30
      %s33 = sphi 0, %s31
      %s34 = sphi 0, %s32
      %s35 = sphi 0, %s33
      %s47 = sphi 0, %s49
      %s50 = sphi 0, %s47
      %s51 = sphi 0, %s50
      %s67 = sphi 0, %s51
      %s71 = sphi 0, %s71
      %s73 = sphi 0, %s71
      %s74 = sphi 0, %s73
      %s88 = sphi 0, %s74
      %s92 = sphi 0, %s92
      %s94 = sphi 0, %s92
      %s95 = sphi 0, %s94
      %s109 = sphi 0, %s95
      %s113 = sphi 0, %s113
      %s115 = sphi 0, %s113
      %s116 = sphi 0, %s115
      %s130 = sphi 0, %s116
      %s134 = sphi 0, %s134
      %s136 = sphi 0, %s134
      %s137 = sphi 0, %s136
      %s151 = sphi 0, %s137
      %s155 = sphi 0, %s155
      %s157 = sphi 0, %s155
      %s158 = sphi 0, %s157
      %s172 = sphi 0, %s158
      %s176 = sphi 0, %s176
      %s178 = sphi 0, %s176
      %s179 = sphi 0, %s178
      %s193 = sphi 0, %s179
      %s197 = sphi 0, %s197
      %s199 = sphi 0, %s197
      %s200 = sphi 0, %s199
      %s214 = sphi 0, %s200
      %s218 = sphi 0, %s218
      %s220 = sphi 0, %s218
      %s221 = sphi 0, %s220
      %s235 = sphi 0, %s221
      %s243 = sphi 0, %s245
      %s246 = sphi 0, %s243
      %s247 = sphi 0, %s246
      %s263 = sphi 0, %s247
      %s271 = sphi 0, %s273
      %s274 = sphi 0, %s271
      %s275 = sphi 0, %s274
      %s291 = sphi 0, %s275
    $region4: #{tpu_custom_call.1} parent=1 // loop_header_branch
      %26 = sbr.rel (%p24) target = $region8
    $region5: #{tpu_custom_call.1} parent=1 // loop_body
      %s28 = ssub.s32 %s23, 1
      %s29 = ssub.s32 %s23, 2
      %s36 = sadd.s32 1, %s31
      %p37 = scmp.ge.s32.totalorder %s36, 1
      %s38 = scalar_select %p37, 0, %s36
      %s39 = sadd.s32 1, %s30
      %s40 = scalar_select %p37, %s39, %s30
      %p41 = scmp.ge.s32.totalorder %s40, 2
      %s42 = scalar_select %p41, 0, %s40
      %s43 = ssub.s32 %s30, %s42
      %s44 = ssub.s32 %s31, %s38
      %s45 = sor.u32 %s43, %s44
      %p46 = scmp.eq.s32.totalorder %s45, 0
      %s48 = sadd.s32 %s47, 1
      %s49 = scalar_select %p46, %s47, %s48
      %p52 = pneg %p46
      %p53 = scmp.eq.s32.totalorder %s23, 1
      %p54 = por %p52, %p53
      %p55 = scmp.ne.s32.totalorder %s47, %s50
      %p56 = scmp.eq.s32.totalorder %s23, 0
      %p57 = por %p55, %p56
      %p58 = scmp.ne.s32.totalorder %s47, %s50
      %p59 = scmp.eq.s32.totalorder %s28, 1
      %p60 = por %p58, %p59
      %p61 = scmp.ne.s32.totalorder %s50, %s51
      %p62 = scmp.eq.s32.totalorder %s28, 0
      %p63 = por %p61, %p62
      %p64 = scmp.ne.s32.totalorder %s50, %s51
      %p65 = scmp.eq.s32.totalorder %s29, 1
      %p66 = por %p64, %p65
      %p68 = scmp.ne.s32.totalorder %s51, %s67
      %p69 = scmp.eq.s32.totalorder %s29, 0
      %p70 = por %p68, %p69
      %s72 = sadd.s32 %s71, 1
      %p75 = scmp.eq.s32.totalorder %s23, 1
      %p76 = scmp.ne.s32.totalorder %s71, %s73
      %p77 = scmp.eq.s32.totalorder %s23, 0
      %p78 = por %p76, %p77
      %p79 = scmp.ne.s32.totalorder %s71, %s73
      %p80 = scmp.eq.s32.totalorder %s28, 1
      %p81 = por %p79, %p80
      %p82 = scmp.ne.s32.totalorder %s73, %s74
      %p83 = scmp.eq.s32.totalorder %s28, 0
      %p84 = por %p82, %p83
      %p85 = scmp.ne.s32.totalorder %s73, %s74
      %p86 = scmp.eq.s32.totalorder %s29, 1
      %p87 = por %p85, %p86
      %p89 = scmp.ne.s32.totalorder %s74, %s88
      %p90 = scmp.eq.s32.totalorder %s29, 0
      %p91 = por %p89, %p90
      %s93 = sadd.s32 %s92, 1
      %p96 = scmp.eq.s32.totalorder %s23, 1
      %p97 = scmp.ne.s32.totalorder %s92, %s94
      %p98 = scmp.eq.s32.totalorder %s23, 0
      %p99 = por %p97, %p98
      %p100 = scmp.ne.s32.totalorder %s92, %s94
      %p101 = scmp.eq.s32.totalorder %s28, 1
      %p102 = por %p100, %p101
      %p103 = scmp.ne.s32.totalorder %s94, %s95
      %p104 = scmp.eq.s32.totalorder %s28, 0
      %p105 = por %p103, %p104
      %p106 = scmp.ne.s32.totalorder %s94, %s95
      %p107 = scmp.eq.s32.totalorder %s29, 1
      %p108 = por %p106, %p107
      %p110 = scmp.ne.s32.totalorder %s95, %s109
      %p111 = scmp.eq.s32.totalorder %s29, 0
      %p112 = por %p110, %p111
      %s114 = sadd.s32 %s113, 1
      %p117 = scmp.eq.s32.totalorder %s23, 1
      %p118 = scmp.ne.s32.totalorder %s113, %s115
      %p119 = scmp.eq.s32.totalorder %s23, 0
      %p120 = por %p118, %p119
      %p121 = scmp.ne.s32.totalorder %s113, %s115
      %p122 = scmp.eq.s32.totalorder %s28, 1
      %p123 = por %p121, %p122
      %p124 = scmp.ne.s32.totalorder %s115, %s116
      %p125 = scmp.eq.s32.totalorder %s28, 0
      %p126 = por %p124, %p125
      %p127 = scmp.ne.s32.totalorder %s115, %s116
      %p128 = scmp.eq.s32.totalorder %s29, 1
      %p129 = por %p127, %p128
      %p131 = scmp.ne.s32.totalorder %s116, %s130
      %p132 = scmp.eq.s32.totalorder %s29, 0
      %p133 = por %p131, %p132
      %s135 = sadd.s32 %s134, 1
      %p138 = scmp.eq.s32.totalorder %s23, 1
      %p139 = scmp.ne.s32.totalorder %s134, %s136
      %p140 = scmp.eq.s32.totalorder %s23, 0
      %p141 = por %p139, %p140
      %p142 = scmp.ne.s32.totalorder %s134, %s136
      %p143 = scmp.eq.s32.totalorder %s28, 1
      %p144 = por %p142, %p143
      %p145 = scmp.ne.s32.totalorder %s136, %s137
      %p146 = scmp.eq.s32.totalorder %s28, 0
      %p147 = por %p145, %p146
      %p148 = scmp.ne.s32.totalorder %s136, %s137
      %p149 = scmp.eq.s32.totalorder %s29, 1
      %p150 = por %p148, %p149
      %p152 = scmp.ne.s32.totalorder %s137, %s151
      %p153 = scmp.eq.s32.totalorder %s29, 0
      %p154 = por %p152, %p153
      %s156 = sadd.s32 %s155, 1
      %p159 = scmp.eq.s32.totalorder %s23, 1
      %p160 = scmp.ne.s32.totalorder %s155, %s157
      %p161 = scmp.eq.s32.totalorder %s23, 0
      %p162 = por %p160, %p161
      %p163 = scmp.ne.s32.totalorder %s155, %s157
      %p164 = scmp.eq.s32.totalorder %s28, 1
      %p165 = por %p163, %p164
      %p166 = scmp.ne.s32.totalorder %s157, %s158
      %p167 = scmp.eq.s32.totalorder %s28, 0
      %p168 = por %p166, %p167
      %p169 = scmp.ne.s32.totalorder %s157, %s158
      %p170 = scmp.eq.s32.totalorder %s29, 1
      %p171 = por %p169, %p170
      %p173 = scmp.ne.s32.totalorder %s158, %s172
      %p174 = scmp.eq.s32.totalorder %s29, 0
      %p175 = por %p173, %p174
      %s177 = sadd.s32 %s176, 1
      %p180 = scmp.eq.s32.totalorder %s23, 1
      %p181 = scmp.ne.s32.totalorder %s176, %s178
      %p182 = scmp.eq.s32.totalorder %s23, 0
      %p183 = por %p181, %p182
      %p184 = scmp.ne.s32.totalorder %s176, %s178
      %p185 = scmp.eq.s32.totalorder %s28, 1
      %p186 = por %p184, %p185
      %p187 = scmp.ne.s32.totalorder %s178, %s179
      %p188 = scmp.eq.s32.totalorder %s28, 0
      %p189 = por %p187, %p188
      %p190 = scmp.ne.s32.totalorder %s178, %s179
      %p191 = scmp.eq.s32.totalorder %s29, 1
      %p192 = por %p190, %p191
      %p194 = scmp.ne.s32.totalorder %s179, %s193
      %p195 = scmp.eq.s32.totalorder %s29, 0
      %p196 = por %p194, %p195
      %s198 = sadd.s32 %s197, 1
      %p201 = scmp.eq.s32.totalorder %s23, 1
      %p202 = scmp.ne.s32.totalorder %s197, %s199
      %p203 = scmp.eq.s32.totalorder %s23, 0
      %p204 = por %p202, %p203
      %p205 = scmp.ne.s32.totalorder %s197, %s199
      %p206 = scmp.eq.s32.totalorder %s28, 1
      %p207 = por %p205, %p206
      %p208 = scmp.ne.s32.totalorder %s199, %s200
      %p209 = scmp.eq.s32.totalorder %s28, 0
      %p210 = por %p208, %p209
      %p211 = scmp.ne.s32.totalorder %s199, %s200
      %p212 = scmp.eq.s32.totalorder %s29, 1
      %p213 = por %p211, %p212
      %p215 = scmp.ne.s32.totalorder %s200, %s214
      %p216 = scmp.eq.s32.totalorder %s29, 0
      %p217 = por %p215, %p216
      %s219 = sadd.s32 %s218, 1
      %p222 = scmp.eq.s32.totalorder %s23, 1
      %p223 = scmp.ne.s32.totalorder %s218, %s220
      %p224 = scmp.eq.s32.totalorder %s23, 0
      %p225 = por %p223, %p224
      %p226 = scmp.ne.s32.totalorder %s218, %s220
      %p227 = scmp.eq.s32.totalorder %s28, 1
      %p228 = por %p226, %p227
      %p229 = scmp.ne.s32.totalorder %s220, %s221
      %p230 = scmp.eq.s32.totalorder %s28, 0
      %p231 = por %p229, %p230
      %p232 = scmp.ne.s32.totalorder %s220, %s221
      %p233 = scmp.eq.s32.totalorder %s29, 1
      %p234 = por %p232, %p233
      %p236 = scmp.ne.s32.totalorder %s221, %s235
      %p237 = scmp.eq.s32.totalorder %s29, 0
      %p238 = por %p236, %p237
      %s239 = ssub.s32 %s30, %s42
      %s240 = ssub.s32 %s31, %s38
      %s241 = sor.u32 %s239, %s240
      %p242 = scmp.eq.s32.totalorder %s241, 0
      %s244 = sadd.s32 %s243, 1
      %s245 = scalar_select %p242, %s243, %s244
      %p248 = pneg %p242
      %p249 = scmp.eq.s32.totalorder %s23, 1
      %p250 = por %p248, %p249
      %p251 = scmp.ne.s32.totalorder %s243, %s246
      %p252 = scmp.eq.s32.totalorder %s23, 0
      %p253 = por %p251, %p252
      %p254 = scmp.ne.s32.totalorder %s243, %s246
      %p255 = scmp.eq.s32.totalorder %s28, 1
      %p256 = por %p254, %p255
      %p257 = scmp.ne.s32.totalorder %s246, %s247
      %p258 = scmp.eq.s32.totalorder %s28, 0
      %p259 = por %p257, %p258
      %p260 = scmp.ne.s32.totalorder %s246, %s247
      %p261 = scmp.eq.s32.totalorder %s29, 1
      %p262 = por %p260, %p261
      %p264 = scmp.ne.s32.totalorder %s247, %s263
      %p265 = scmp.eq.s32.totalorder %s29, 0
      %p266 = por %p264, %p265
      %s267 = ssub.s32 %s30, %s42
      %s268 = ssub.s32 %s31, %s38
      %s269 = sor.u32 %s267, %s268
      %p270 = scmp.eq.s32.totalorder %s269, 0
      %s272 = sadd.s32 %s271, 1
      %s273 = scalar_select %p270, %s271, %s272
      %p276 = pneg %p270
      %p277 = scmp.eq.s32.totalorder %s23, 1
      %p278 = por %p276, %p277
      %p279 = scmp.ne.s32.totalorder %s271, %s274
      %p280 = scmp.eq.s32.totalorder %s23, 0
      %p281 = por %p279, %p280
      %p282 = scmp.ne.s32.totalorder %s271, %s274
      %p283 = scmp.eq.s32.totalorder %s28, 1
      %p284 = por %p282, %p283
      %p285 = scmp.ne.s32.totalorder %s274, %s275
      %p286 = scmp.eq.s32.totalorder %s28, 0
      %p287 = por %p285, %p286
      %p288 = scmp.ne.s32.totalorder %s274, %s275
      %p289 = scmp.eq.s32.totalorder %s29, 1
      %p290 = por %p288, %p289
      %p292 = scmp.ne.s32.totalorder %s275, %s291
      %p293 = scmp.eq.s32.totalorder %s29, 0
      %p294 = por %p292, %p293
      %p295 = scmp.le.s32.totalorder 1, %s23
      %p296 = scmp.lt.s32.totalorder %s23, 3
      %p297 = pnand %p295, %p296
      %p298 = pneg %p297
      // Predicated region
      $region9: #{tpu_custom_call.1} parent=5 // pred_check
        _
      $region10: #{tpu_custom_call.1} parent=5 // pred_check_branch
        %300 = sbr.rel (%p297) target = $region12
      $region11: #{tpu_custom_call.1} parent=5 // pred_region
        %s301 = ssub.s32 %s23, 1
        // Predicated region
        $region13: #{tpu_custom_call.1} parent=11 // pred_check
          %p302 = pneg %p84
        $region14: #{tpu_custom_call.1} parent=11 // pred_check_branch
          %304 = sbr.rel (%p302) target = $region16
        $region15: #{tpu_custom_call.1} parent=11 // pred_region
          _
        $region16: #{tpu_custom_call.1} parent=11 // pred_fallthru
          _
        // Predicated region
        $region17: #{tpu_custom_call.1} parent=11 // pred_check
          %p305 = pneg %p105
        $region18: #{tpu_custom_call.1} parent=11 // pred_check_branch
          %307 = sbr.rel (%p305) target = $region20
        $region19: #{tpu_custom_call.1} parent=11 // pred_region
          _
        $region20: #{tpu_custom_call.1} parent=11 // pred_fallthru
          _
        // Predicated region
        $region21: #{tpu_custom_call.1} parent=11 // pred_check
          %p308 = pneg %p126
        $region22: #{tpu_custom_call.1} parent=11 // pred_check_branch
          %310 = sbr.rel (%p308) target = $region24
        $region23: #{tpu_custom_call.1} parent=11 // pred_region
          _
        $region24: #{tpu_custom_call.1} parent=11 // pred_fallthru
          _
        // Predicated region
        $region25: #{tpu_custom_call.1} parent=11 // pred_check
          %p311 = pneg %p147
        $region26: #{tpu_custom_call.1} parent=11 // pred_check_branch
          %313 = sbr.rel (%p311) target = $region28
        $region27: #{tpu_custom_call.1} parent=11 // pred_region
          _
        $region28: #{tpu_custom_call.1} parent=11 // pred_fallthru
          _
        // Predicated region
        $region29: #{tpu_custom_call.1} parent=11 // pred_check
          %p314 = pneg %p168
        $region30: #{tpu_custom_call.1} parent=11 // pred_check_branch
          %316 = sbr.rel (%p314) target = $region32
        $region31: #{tpu_custom_call.1} parent=11 // pred_region
          _
        $region32: #{tpu_custom_call.1} parent=11 // pred_fallthru
          _
        // Predicated region
        $region33: #{tpu_custom_call.1} parent=11 // pred_check
          %p317 = pneg %p189
        $region34: #{tpu_custom_call.1} parent=11 // pred_check_branch
          %319 = sbr.rel (%p317) target = $region36
        $region35: #{tpu_custom_call.1} parent=11 // pred_region
          _
        $region36: #{tpu_custom_call.1} parent=11 // pred_fallthru
          _
        // Predicated region
        $region37: #{tpu_custom_call.1} parent=11 // pred_check
          %p320 = pneg %p210
        $region38: #{tpu_custom_call.1} parent=11 // pred_check_branch
          %322 = sbr.rel (%p320) target = $region40
        $region39: #{tpu_custom_call.1} parent=11 // pred_region
          _
        $region40: #{tpu_custom_call.1} parent=11 // pred_fallthru
          _
        // Predicated region
        $region41: #{tpu_custom_call.1} parent=11 // pred_check
          %p323 = pneg %p231
        $region42: #{tpu_custom_call.1} parent=11 // pred_check_branch
          %325 = sbr.rel (%p323) target = $region44
        $region43: #{tpu_custom_call.1} parent=11 // pred_region
          _
        $region44: #{tpu_custom_call.1} parent=11 // pred_fallthru
          _
      $region12: #{tpu_custom_call.1} parent=5 // pred_fallthru
        _
      %p326 = scmp.lt.s32.totalorder %s23, 2
      // Predicated region
      $region45: #{tpu_custom_call.1} parent=5 // pred_check
        %p327 = pneg %p326
      $region46: #{tpu_custom_call.1} parent=5 // pred_check_branch
        %329 = sbr.rel (%p327) target = $region48
      $region47: #{tpu_custom_call.1} parent=5 // pred_region
        // Predicated region
        $region49: #{tpu_custom_call.1} parent=47 // pred_check
          %p330 = pneg %p57
        $region50: #{tpu_custom_call.1} parent=47 // pred_check_branch
          %332 = sbr.rel (%p330) target = $region52
        $region51: #{tpu_custom_call.1} parent=47 // pred_region
          %p333 = scmp.lt.s32.totalorder %s30, 1
          %s334 = scalar_select %p333, %s30, 1
          %p335 = scmp.lt.s32.totalorder %s31, 0
          %s336 = scalar_select %p335, %s31, 0
          %s337 = sadd.s32 %s336, %s334
          %s338 = smul.addr %s337, 8
          %s339 = scalar_lea.vmem %s0, %s338
        $region52: #{tpu_custom_call.1} parent=47 // pred_fallthru
          _
      $region48: #{tpu_custom_call.1} parent=5 // pred_fallthru
        _
      %p340 = scmp.le.s32.totalorder 1, %s23
      %p341 = scmp.lt.s32.totalorder %s23, 3
      %p342 = pnand %p340, %p341
      %p343 = pneg %p342
      // Predicated region
      $region53: #{tpu_custom_call.1} parent=5 // pred_check
        _
      $region54: #{tpu_custom_call.1} parent=5 // pred_check_branch
        %345 = sbr.rel (%p342) target = $region56
      $region55: #{tpu_custom_call.1} parent=5 // pred_region
        %s346 = ssub.s32 %s23, 1
        %p347 = scmp.lt.s32.totalorder %s32, 1
        %s348 = scalar_select %p347, %s32, 1
        %p349 = scmp.lt.s32.totalorder %s33, 0
        %s350 = scalar_select %p349, %s33, 0
        %s351 = sadd.s32 %s350, %s348
        %s352 = smul.addr %s351, 8
        %s353 = scalar_lea.vmem %s0, %s352
        %p354 = pneg %p63
        %p355 = pneg %p60
        %p356 = pneg %p84
        %p357 = pneg %p81
        %p358 = pneg %p105
        %p359 = pneg %p102
        %p360 = pneg %p126
        %p361 = pneg %p123
        %p362 = pneg %p147
        %p363 = pneg %p144
        %p364 = pneg %p168
        %p365 = pneg %p165
        %p366 = pneg %p189
        %p367 = pneg %p186
        %p368 = pneg %p210
        %p369 = pneg %p207
        %p370 = pneg %p231
        %p371 = pneg %p228
        %p372 = pneg %p259
        %p373 = pneg %p256
        %s374 = sand.u32 %s246, 1
        %s375 = scalar_lea.sflag [#allocation3], %s374
        %s376 = sand.u32 %s246, 1
        %s377 = smul.addr %s376, 16
        %s378 = scalar_lea.vmem [#allocation2], %s377
        %p379 = pneg %p287
        %p380 = pneg %p284
        %s381 = sand.u32 %s274, 1
        %s382 = scalar_lea.sflag [#allocation5], %s381
        %s383 = sand.u32 %s274, 1
        %s384 = smul.addr %s383, 16
        %s385 = scalar_lea.vmem [#allocation4], %s384
        %p386 = scmp.lt.s32.totalorder %s32, 1
        %s387 = scalar_select %p386, %s32, 1
        %p388 = scmp.lt.s32.totalorder %s33, 0
        %s389 = scalar_select %p388, %s33, 0
        %s390 = sadd.s32 %s389, %s387
        %s391 = smul.addr %s390, 8
        %s392 = scalar_lea.vmem %s0, %s391
        %v393 = vld [vmem:[%s392] sm:$0xff]
        %v394 = vld [vmem:[%s1] sm:$0xff]
        %v395 = vld [vmem:[%s3] sm:$0xff]
        %v396 = vld [vmem:[%s3 + $0x8] sm:$0xff]
        %v397 = vld [vmem:[%s3 + $0x10] sm:$0xff]
        %v398 = vld [vmem:[%s3 + $0x18] sm:$0xff]
        %v399 = vld [vmem:[%s3 + $0x20] sm:$0xff]
        %v400 = vld [vmem:[%s3 + $0x28] sm:$0xff]
        %v401 = vld [vmem:[%s3 + $0x30] sm:$0xff]
        %v402 = vld [vmem:[%s3 + $0x38] sm:$0xff]
        %v403 = vld [vmem:[%s2] sm:$0x1]
        %v405 = vperm.slane %v403, 0
        %vm407 = vcmask 64512
        %v409 = vsel %vm407, %v393, 0
        %v412 = vsel %vm407, %v394, 0
        %414 = vmatpush.xpose.msra.mxu0 0.0
        %415 = vmatpush.xpose.msra.mxu0 0.0
        %416 = vmatpush.xpose.msra.mxu0 0.0
        %417 = vmatpush.xpose.msra.mxu0 0.0
        %418 = vmatpush.xpose.msra.mxu0 0.0
        %419 = vmatpush.xpose.msra.mxu0 0.0
        %420 = vmatpush.xpose.msra.mxu0 0.0
        %421 = vmatpush.xpose.msra.mxu0 0.0
        %422 = vmatpush.xpose.msra.mxu0 0.0
        %423 = vmatpush.xpose.msra.mxu0 0.0
        %424 = vmatpush.xpose.msra.mxu0 0.0
        %425 = vmatpush.xpose.msra.mxu0 0.0
        %426 = vmatpush.xpose.msra.mxu0 0.0
        %427 = vmatpush.xpose.msra.mxu0 0.0
        %428 = vmatpush.xpose.msra.mxu0 0.0
        %429 = vmatpush.xpose.msra.mxu0 %v412
        %430 = vmatmul.f32.gmra.mxu0 %v409
        %v431 = vpop.f32.mrf.mxu0
        %v432 = vadd.f32 %v405, %v431
        %433 = vdwg.mxu0
        %v434 = vmul.f32 %v432, 0.5
        %v435 = vmul.f32 %v432, 0.70710677
        %v436 = vmul.f32 %v435, %v435
        %v437 = vmin.f32 16.0, %v436
        %v438 = vmul.f32 %v437, 2.1237322e-06
        %v439 = vadd.f32 %v438, 0.00028619796
        %v440 = vmul.f32 %v437, %v439
        %v441 = vadd.f32 %v440, 0.0036580483
        %v442 = vmul.f32 %v437, %v441
        %v443 = vadd.f32 %v442, 0.05243302
        %v444 = vmul.f32 %v437, %v443
        %v445 = vadd.f32 %v444, 0.18741608
        %v446 = vmul.f32 %v437, %v445
        %v447 = vadd.f32 %v446, 1.1283791
        %v448 = vmul.f32 %v435, %v447
        %v449 = vmul.f32 %v437, 3.8918573e-05
        %v450 = vadd.f32 %v449, 0.001143296
        %v451 = vmul.f32 %v437, %v450
        %v452 = vadd.f32 %v451, 0.014752088
        %v453 = vmul.f32 %v437, %v452
        %v454 = vadd.f32 %v453, 0.112945676
        %v455 = vmul.f32 %v437, %v454
        %v456 = vadd.f32 %v455, 0.4994258
        %v457 = vmul.f32 %v437, %v456
        %v458 = vadd.f32 %v457, 1.0
        %v459 = vrcp.pop %v458
        %v460 = vmul.f32 %v458, %v459
        %v461 = vsub.f32 1.0, %v460
        %v462 = vmul.f32 %v459, %v461
        %v463 = vadd.f32 %v459, %v462
        %vm464 = vweird.f32 %v458
        %vm465 = vweird.f32 %v459
        %vm466 = vmor %vm464, %vm465
        %v467 = vsel %vm466, %v459, %v463
        %v468 = vand.u32 2147483647, %v458
        %vm469 = vcmp.eq.f32.partialorder %v468, 8.507059e+37
        %v470 = vand.u32 %v458, 2147483648
        %v471 = vor.u32 1.1754944e-38, %v470
        %v472 = vsel %vm469, %v471, %v467
        %v473 = vmul.f32 %v448, %v472
        %v474 = vmin.f32 %v473, 1.0
        %v475 = vmax.f32 %v474, -1.0
        %v476 = vadd.f32 %v475, 1.0
        %v477 = vmul.f32 %v434, %v476
        %v478 = vld [vmem:[%s4] sm:$0x1]
        %v480 = vperm.slane %v478, 0
        %v483 = vsel %vm407, %v477, 0
        %v486 = vsel %vm407, %v395, 0
        %v489 = vsel %vm407, %v396, 0
        %v492 = vsel %vm407, %v397, 0
        %v495 = vsel %vm407, %v398, 0
        %v498 = vsel %vm407, %v399, 0
        %v501 = vsel %vm407, %v400, 0
        %v504 = vsel %vm407, %v401, 0
        %v507 = vsel %vm407, %v402, 0
        %509 = vmatpush.xpose.msra.mxu0 0.0
        %510 = vmatpush.xpose.msra.mxu0 0.0
        %511 = vmatpush.xpose.msra.mxu0 0.0
        %512 = vmatpush.xpose.msra.mxu0 0.0
        %513 = vmatpush.xpose.msra.mxu0 0.0
        %514 = vmatpush.xpose.msra.mxu0 0.0
        %515 = vmatpush.xpose.msra.mxu0 0.0
        %516 = vmatpush.xpose.msra.mxu0 0.0
        %517 = vmatpush.xpose.msra.mxu0 %v507
        %518 = vmatpush.xpose.msra.mxu0 %v504
        %519 = vmatpush.xpose.msra.mxu0 %v501
        %520 = vmatpush.xpose.msra.mxu0 %v498
        %521 = vmatpush.xpose.msra.mxu0 %v495
        %522 = vmatpush.xpose.msra.mxu0 %v492
        %523 = vmatpush.xpose.msra.mxu0 %v489
        %524 = vmatpush.xpose.msra.mxu0 %v486
        %525 = vmatmul.f32.gmra.mxu0 %v483
        %v526 = vpop.f32.mrf.mxu0
        %v527 = vadd.f32 %v480, %v526
        %528 = vdwg.mxu0
        %v529 = vld [vmem:[%s5] sm:$0xff]
        %v530 = vld [vmem:[%s7] sm:$0xff]
        %v531 = vld [vmem:[%s7 + $0x8] sm:$0xff]
        %v532 = vld [vmem:[%s7 + $0x10] sm:$0xff]
        %v533 = vld [vmem:[%s7 + $0x18] sm:$0xff]
        %v534 = vld [vmem:[%s7 + $0x20] sm:$0xff]
        %v535 = vld [vmem:[%s7 + $0x28] sm:$0xff]
        %v536 = vld [vmem:[%s7 + $0x30] sm:$0xff]
        %v537 = vld [vmem:[%s7 + $0x38] sm:$0xff]
        %v538 = vld [vmem:[%s6] sm:$0x1]
        %v540 = vperm.slane %v538, 0
        %v543 = vsel %vm407, %v529, 0
        %545 = vmatpush.xpose.msra.mxu0 0.0
        %546 = vmatpush.xpose.msra.mxu0 0.0
        %547 = vmatpush.xpose.msra.mxu0 0.0
        %548 = vmatpush.xpose.msra.mxu0 0.0
        %549 = vmatpush.xpose.msra.mxu0 0.0
        %550 = vmatpush.xpose.msra.mxu0 0.0
        %551 = vmatpush.xpose.msra.mxu0 0.0
        %552 = vmatpush.xpose.msra.mxu0 0.0
        %553 = vmatpush.xpose.msra.mxu0 0.0
        %554 = vmatpush.xpose.msra.mxu0 0.0
        %555 = vmatpush.xpose.msra.mxu0 0.0
        %556 = vmatpush.xpose.msra.mxu0 0.0
        %557 = vmatpush.xpose.msra.mxu0 0.0
        %558 = vmatpush.xpose.msra.mxu0 0.0
        %559 = vmatpush.xpose.msra.mxu0 0.0
        %560 = vmatpush.xpose.msra.mxu0 %v543
        %561 = vmatmul.f32.gmra.mxu0 %v409
        %v562 = vpop.f32.mrf.mxu0
        %v563 = vadd.f32 %v540, %v562
        %564 = vdwg.mxu0
        %v565 = vmul.f32 %v563, 0.5
        %v566 = vmul.f32 %v563, 0.70710677
        %v567 = vmul.f32 %v566, %v566
        %v568 = vmin.f32 16.0, %v567
        %v569 = vmul.f32 %v568, 2.1237322e-06
        %v570 = vadd.f32 %v569, 0.00028619796
        %v571 = vmul.f32 %v568, %v570
        %v572 = vadd.f32 %v571, 0.0036580483
        %v573 = vmul.f32 %v568, %v572
        %v574 = vadd.f32 %v573, 0.05243302
        %v575 = vmul.f32 %v568, %v574
        %v576 = vadd.f32 %v575, 0.18741608
        %v577 = vmul.f32 %v568, %v576
        %v578 = vadd.f32 %v577, 1.1283791
        %v579 = vmul.f32 %v566, %v578
        %v580 = vmul.f32 %v568, 3.8918573e-05
        %v581 = vadd.f32 %v580, 0.001143296
        %v582 = vmul.f32 %v568, %v581
        %v583 = vadd.f32 %v582, 0.014752088
        %v584 = vmul.f32 %v568, %v583
        %v585 = vadd.f32 %v584, 0.112945676
        %v586 = vmul.f32 %v568, %v585
        %v587 = vadd.f32 %v586, 0.4994258
        %v588 = vmul.f32 %v568, %v587
        %v589 = vadd.f32 %v588, 1.0
        %v590 = vrcp.pop %v589
        %v591 = vmul.f32 %v589, %v590
        %v592 = vsub.f32 1.0, %v591
        %v593 = vmul.f32 %v590, %v592
        %v594 = vadd.f32 %v590, %v593
        %vm595 = vweird.f32 %v589
        %vm596 = vweird.f32 %v590
        %vm597 = vmor %vm595, %vm596
        %v598 = vsel %vm597, %v590, %v594
        %v599 = vand.u32 2147483647, %v589
        %vm600 = vcmp.eq.f32.partialorder %v599, 8.507059e+37
        %v601 = vand.u32 %v589, 2147483648
        %v602 = vor.u32 1.1754944e-38, %v601
        %v603 = vsel %vm600, %v602, %v598
        %v604 = vmul.f32 %v579, %v603
        %v605 = vmin.f32 %v604, 1.0
        %v606 = vmax.f32 %v605, -1.0
        %v607 = vadd.f32 %v606, 1.0
        %v608 = vmul.f32 %v565, %v607
        %v609 = vld [vmem:[%s8] sm:$0x1]
        %v611 = vperm.slane %v609, 0
        %v614 = vsel %vm407, %v608, 0
        %v617 = vsel %vm407, %v530, 0
        %v620 = vsel %vm407, %v531, 0
        %v623 = vsel %vm407, %v532, 0
        %v626 = vsel %vm407, %v533, 0
        %v629 = vsel %vm407, %v534, 0
        %v632 = vsel %vm407, %v535, 0
        %v635 = vsel %vm407, %v536, 0
        %v638 = vsel %vm407, %v537, 0
        %640 = vmatpush.xpose.msra.mxu0 0.0
        %641 = vmatpush.xpose.msra.mxu0 0.0
        %642 = vmatpush.xpose.msra.mxu0 0.0
        %643 = vmatpush.xpose.msra.mxu0 0.0
        %644 = vmatpush.xpose.msra.mxu0 0.0
        %645 = vmatpush.xpose.msra.mxu0 0.0
        %646 = vmatpush.xpose.msra.mxu0 0.0
        %647 = vmatpush.xpose.msra.mxu0 0.0
        %648 = vmatpush.xpose.msra.mxu0 %v638
        %649 = vmatpush.xpose.msra.mxu0 %v635
        %650 = vmatpush.xpose.msra.mxu0 %v632
        %651 = vmatpush.xpose.msra.mxu0 %v629
        %652 = vmatpush.xpose.msra.mxu0 %v626
        %653 = vmatpush.xpose.msra.mxu0 %v623
        %654 = vmatpush.xpose.msra.mxu0 %v620
        %655 = vmatpush.xpose.msra.mxu0 %v617
        %656 = vmatmul.f32.gmra.mxu0 %v614
        %v657 = vpop.f32.mrf.mxu0
        %v658 = vadd.f32 %v611, %v657
        %659 = vdwg.mxu0
        %s660 = scalar_lea.vmem %s1, 8
        %v661 = vld [vmem:[%s660] sm:$0xff]
        %s662 = scalar_lea.vmem %s3, 64
        %v663 = vld [vmem:[%s662] sm:$0xff]
        %v664 = vld [vmem:[%s662 + $0x8] sm:$0xff]
        %v665 = vld [vmem:[%s662 + $0x10] sm:$0xff]
        %v666 = vld [vmem:[%s662 + $0x18] sm:$0xff]
        %v667 = vld [vmem:[%s662 + $0x20] sm:$0xff]
        %v668 = vld [vmem:[%s662 + $0x28] sm:$0xff]
        %v669 = vld [vmem:[%s662 + $0x30] sm:$0xff]
        %v670 = vld [vmem:[%s662 + $0x38] sm:$0xff]
        %s671 = scalar_lea.vmem %s2, 1
        %v672 = vld [vmem:[%s671] sm:$0x1]
        %v674 = vperm.slane %v672, 0
        %676 = vrot.lane.b32.xlu0 %v393, 120
        %v677 = vpop.permute.xlu0 %676
        %v678 = vsel %vm407, %v677, 0
        %v681 = vsel %vm407, %v661, 0
        %683 = vmatpush.xpose.msra.mxu0 0.0
        %684 = vmatpush.xpose.msra.mxu0 0.0
        %685 = vmatpush.xpose.msra.mxu0 0.0
        %686 = vmatpush.xpose.msra.mxu0 0.0
        %687 = vmatpush.xpose.msra.mxu0 0.0
        %688 = vmatpush.xpose.msra.mxu0 0.0
        %689 = vmatpush.xpose.msra.mxu0 0.0
        %690 = vmatpush.xpose.msra.mxu0 0.0
        %691 = vmatpush.xpose.msra.mxu0 0.0
        %692 = vmatpush.xpose.msra.mxu0 0.0
        %693 = vmatpush.xpose.msra.mxu0 0.0
        %694 = vmatpush.xpose.msra.mxu0 0.0
        %695 = vmatpush.xpose.msra.mxu0 0.0
        %696 = vmatpush.xpose.msra.mxu0 0.0
        %697 = vmatpush.xpose.msra.mxu0 0.0
        %698 = vmatpush.xpose.msra.mxu0 %v681
        %699 = vmatmul.f32.gmra.mxu0 %v678
        %v700 = vpop.f32.mrf.mxu0
        %v701 = vadd.f32 %v674, %v700
        %702 = vdwg.mxu0
        %v703 = vmul.f32 %v701, 0.5
        %v704 = vmul.f32 %v701, 0.70710677
        %v705 = vmul.f32 %v704, %v704
        %v706 = vmin.f32 16.0, %v705
        %v707 = vmul.f32 %v706, 2.1237322e-06
        %v708 = vadd.f32 %v707, 0.00028619796
        %v709 = vmul.f32 %v706, %v708
        %v710 = vadd.f32 %v709, 0.0036580483
        %v711 = vmul.f32 %v706, %v710
        %v712 = vadd.f32 %v711, 0.05243302
        %v713 = vmul.f32 %v706, %v712
        %v714 = vadd.f32 %v713, 0.18741608
        %v715 = vmul.f32 %v706, %v714
        %v716 = vadd.f32 %v715, 1.1283791
        %v717 = vmul.f32 %v704, %v716
        %v718 = vmul.f32 %v706, 3.8918573e-05
        %v719 = vadd.f32 %v718, 0.001143296
        %v720 = vmul.f32 %v706, %v719
        %v721 = vadd.f32 %v720, 0.014752088
        %v722 = vmul.f32 %v706, %v721
        %v723 = vadd.f32 %v722, 0.112945676
        %v724 = vmul.f32 %v706, %v723
        %v725 = vadd.f32 %v724, 0.4994258
        %v726 = vmul.f32 %v706, %v725
        %v727 = vadd.f32 %v726, 1.0
        %v728 = vrcp.pop %v727
        %v729 = vmul.f32 %v727, %v728
        %v730 = vsub.f32 1.0, %v729
        %v731 = vmul.f32 %v728, %v730
        %v732 = vadd.f32 %v728, %v731
        %vm733 = vweird.f32 %v727
        %vm734 = vweird.f32 %v728
        %vm735 = vmor %vm733, %vm734
        %v736 = vsel %vm735, %v728, %v732
        %v737 = vand.u32 2147483647, %v727
        %vm738 = vcmp.eq.f32.partialorder %v737, 8.507059e+37
        %v739 = vand.u32 %v727, 2147483648
        %v740 = vor.u32 1.1754944e-38, %v739
        %v741 = vsel %vm738, %v740, %v736
        %v742 = vmul.f32 %v717, %v741
        %v743 = vmin.f32 %v742, 1.0
        %v744 = vmax.f32 %v743, -1.0
        %v745 = vadd.f32 %v744, 1.0
        %v746 = vmul.f32 %v703, %v745
        %s747 = scalar_lea.vmem %s4, 1
        %v748 = vld [vmem:[%s747] sm:$0x1]
        %v750 = vperm.slane %v748, 0
        %v753 = vsel %vm407, %v746, 0
        %v756 = vsel %vm407, %v663, 0
        %v759 = vsel %vm407, %v664, 0
        %v762 = vsel %vm407, %v665, 0
        %v765 = vsel %vm407, %v666, 0
        %v768 = vsel %vm407, %v667, 0
        %v771 = vsel %vm407, %v668, 0
        %v774 = vsel %vm407, %v669, 0
        %v777 = vsel %vm407, %v670, 0
        %779 = vmatpush.xpose.msra.mxu0 0.0
        %780 = vmatpush.xpose.msra.mxu0 0.0
        %781 = vmatpush.xpose.msra.mxu0 0.0
        %782 = vmatpush.xpose.msra.mxu0 0.0
        %783 = vmatpush.xpose.msra.mxu0 0.0
        %784 = vmatpush.xpose.msra.mxu0 0.0
        %785 = vmatpush.xpose.msra.mxu0 0.0
        %786 = vmatpush.xpose.msra.mxu0 0.0
        %787 = vmatpush.xpose.msra.mxu0 %v777
        %788 = vmatpush.xpose.msra.mxu0 %v774
        %789 = vmatpush.xpose.msra.mxu0 %v771
        %790 = vmatpush.xpose.msra.mxu0 %v768
        %791 = vmatpush.xpose.msra.mxu0 %v765
        %792 = vmatpush.xpose.msra.mxu0 %v762
        %793 = vmatpush.xpose.msra.mxu0 %v759
        %794 = vmatpush.xpose.msra.mxu0 %v756
        %795 = vmatmul.f32.gmra.mxu0 %v753
        %v796 = vpop.f32.mrf.mxu0
        %v797 = vadd.f32 %v750, %v796
        %798 = vdwg.mxu0
        %s799 = scalar_lea.vmem %s5, 8
        %v800 = vld [vmem:[%s799] sm:$0xff]
        %s801 = scalar_lea.vmem %s7, 64
        %v802 = vld [vmem:[%s801] sm:$0xff]
        %v803 = vld [vmem:[%s801 + $0x8] sm:$0xff]
        %v804 = vld [vmem:[%s801 + $0x10] sm:$0xff]
        %v805 = vld [vmem:[%s801 + $0x18] sm:$0xff]
        %v806 = vld [vmem:[%s801 + $0x20] sm:$0xff]
        %v807 = vld [vmem:[%s801 + $0x28] sm:$0xff]
        %v808 = vld [vmem:[%s801 + $0x30] sm:$0xff]
        %v809 = vld [vmem:[%s801 + $0x38] sm:$0xff]
        %s810 = scalar_lea.vmem %s6, 1
        %v811 = vld [vmem:[%s810] sm:$0x1]
        %v813 = vperm.slane %v811, 0
        %v816 = vsel %vm407, %v800, 0
        %818 = vmatpush.xpose.msra.mxu0 0.0
        %819 = vmatpush.xpose.msra.mxu0 0.0
        %820 = vmatpush.xpose.msra.mxu0 0.0
        %821 = vmatpush.xpose.msra.mxu0 0.0
        %822 = vmatpush.xpose.msra.mxu0 0.0
        %823 = vmatpush.xpose.msra.mxu0 0.0
        %824 = vmatpush.xpose.msra.mxu0 0.0
        %825 = vmatpush.xpose.msra.mxu0 0.0
        %826 = vmatpush.xpose.msra.mxu0 0.0
        %827 = vmatpush.xpose.msra.mxu0 0.0
        %828 = vmatpush.xpose.msra.mxu0 0.0
        %829 = vmatpush.xpose.msra.mxu0 0.0
        %830 = vmatpush.xpose.msra.mxu0 0.0
        %831 = vmatpush.xpose.msra.mxu0 0.0
        %832 = vmatpush.xpose.msra.mxu0 0.0
        %833 = vmatpush.xpose.msra.mxu0 %v816
        %834 = vmatmul.f32.gmra.mxu0 %v678
        %v835 = vpop.f32.mrf.mxu0
        %v836 = vadd.f32 %v813, %v835
        %837 = vdwg.mxu0
        %v838 = vmul.f32 %v836, 0.5
        %v839 = vmul.f32 %v836, 0.70710677
        %v840 = vmul.f32 %v839, %v839
        %v841 = vmin.f32 16.0, %v840
        %v842 = vmul.f32 %v841, 2.1237322e-06
        %v843 = vadd.f32 %v842, 0.00028619796
        %v844 = vmul.f32 %v841, %v843
        %v845 = vadd.f32 %v844, 0.0036580483
        %v846 = vmul.f32 %v841, %v845
        %v847 = vadd.f32 %v846, 0.05243302
        %v848 = vmul.f32 %v841, %v847
        %v849 = vadd.f32 %v848, 0.18741608
        %v850 = vmul.f32 %v841, %v849
        %v851 = vadd.f32 %v850, 1.1283791
        %v852 = vmul.f32 %v839, %v851
        %v853 = vmul.f32 %v841, 3.8918573e-05
        %v854 = vadd.f32 %v853, 0.001143296
        %v855 = vmul.f32 %v841, %v854
        %v856 = vadd.f32 %v855, 0.014752088
        %v857 = vmul.f32 %v841, %v856
        %v858 = vadd.f32 %v857, 0.112945676
        %v859 = vmul.f32 %v841, %v858
        %v860 = vadd.f32 %v859, 0.4994258
        %v861 = vmul.f32 %v841, %v860
        %v862 = vadd.f32 %v861, 1.0
        %v863 = vrcp.pop %v862
        %v864 = vmul.f32 %v862, %v863
        %v865 = vsub.f32 1.0, %v864
        %v866 = vmul.f32 %v863, %v865
        %v867 = vadd.f32 %v863, %v866
        %vm868 = vweird.f32 %v862
        %vm869 = vweird.f32 %v863
        %vm870 = vmor %vm868, %vm869
        %v871 = vsel %vm870, %v863, %v867
        %v872 = vand.u32 2147483647, %v862
        %vm873 = vcmp.eq.f32.partialorder %v872, 8.507059e+37
        %v874 = vand.u32 %v862, 2147483648
        %v875 = vor.u32 1.1754944e-38, %v874
        %v876 = vsel %vm873, %v875, %v871
        %v877 = vmul.f32 %v852, %v876
        %v878 = vmin.f32 %v877, 1.0
        %v879 = vmax.f32 %v878, -1.0
        %v880 = vadd.f32 %v879, 1.0
        %v881 = vmul.f32 %v838, %v880
        %s882 = scalar_lea.vmem %s8, 1
        %v883 = vld [vmem:[%s882] sm:$0x1]
        %v885 = vperm.slane %v883, 0
        %v888 = vsel %vm407, %v881, 0
        %v891 = vsel %vm407, %v802, 0
        %v894 = vsel %vm407, %v803, 0
        %v897 = vsel %vm407, %v804, 0
        %v900 = vsel %vm407, %v805, 0
        %v903 = vsel %vm407, %v806, 0
        %v906 = vsel %vm407, %v807, 0
        %v909 = vsel %vm407, %v808, 0
        %v912 = vsel %vm407, %v809, 0
        %914 = vmatpush.xpose.msra.mxu0 0.0
        %915 = vmatpush.xpose.msra.mxu0 0.0
        %916 = vmatpush.xpose.msra.mxu0 0.0
        %917 = vmatpush.xpose.msra.mxu0 0.0
        %918 = vmatpush.xpose.msra.mxu0 0.0
        %919 = vmatpush.xpose.msra.mxu0 0.0
        %920 = vmatpush.xpose.msra.mxu0 0.0
        %921 = vmatpush.xpose.msra.mxu0 0.0
        %922 = vmatpush.xpose.msra.mxu0 %v912
        %923 = vmatpush.xpose.msra.mxu0 %v909
        %924 = vmatpush.xpose.msra.mxu0 %v906
        %925 = vmatpush.xpose.msra.mxu0 %v903
        %926 = vmatpush.xpose.msra.mxu0 %v900
        %927 = vmatpush.xpose.msra.mxu0 %v897
        %928 = vmatpush.xpose.msra.mxu0 %v894
        %929 = vmatpush.xpose.msra.mxu0 %v891
        %930 = vmatmul.f32.gmra.mxu0 %v888
        %v931 = vpop.f32.mrf.mxu0
        %v932 = vadd.f32 %v885, %v931
        %933 = vdwg.mxu0
        %s934 = scalar_lea.vmem %s1, 16
        %v935 = vld [vmem:[%s934] sm:$0xff]
        %s936 = scalar_lea.vmem %s3, 128
        %v937 = vld [vmem:[%s936] sm:$0xff]
        %v938 = vld [vmem:[%s936 + $0x8] sm:$0xff]
        %v939 = vld [vmem:[%s936 + $0x10] sm:$0xff]
        %v940 = vld [vmem:[%s936 + $0x18] sm:$0xff]
        %v941 = vld [vmem:[%s936 + $0x20] sm:$0xff]
        %v942 = vld [vmem:[%s936 + $0x28] sm:$0xff]
        %v943 = vld [vmem:[%s936 + $0x30] sm:$0xff]
        %v944 = vld [vmem:[%s936 + $0x38] sm:$0xff]
        %s945 = scalar_lea.vmem %s2, 2
        %v946 = vld [vmem:[%s945] sm:$0x1]
        %v948 = vperm.slane %v946, 0
        %950 = vrot.lane.b32.xlu0 %v393, 112
        %v951 = vpop.permute.xlu0 %950
        %v952 = vsel %vm407, %v951, 0
        %v955 = vsel %vm407, %v935, 0
        %957 = vmatpush.xpose.msra.mxu0 0.0
        %958 = vmatpush.xpose.msra.mxu0 0.0
        %959 = vmatpush.xpose.msra.mxu0 0.0
        %960 = vmatpush.xpose.msra.mxu0 0.0
        %961 = vmatpush.xpose.msra.mxu0 0.0
        %962 = vmatpush.xpose.msra.mxu0 0.0
        %963 = vmatpush.xpose.msra.mxu0 0.0
        %964 = vmatpush.xpose.msra.mxu0 0.0
        %965 = vmatpush.xpose.msra.mxu0 0.0
        %966 = vmatpush.xpose.msra.mxu0 0.0
        %967 = vmatpush.xpose.msra.mxu0 0.0
        %968 = vmatpush.xpose.msra.mxu0 0.0
        %969 = vmatpush.xpose.msra.mxu0 0.0
        %970 = vmatpush.xpose.msra.mxu0 0.0
        %971 = vmatpush.xpose.msra.mxu0 0.0
        %972 = vmatpush.xpose.msra.mxu0 %v955
        %973 = vmatmul.f32.gmra.mxu0 %v952
        %v974 = vpop.f32.mrf.mxu0
        %v975 = vadd.f32 %v948, %v974
        %976 = vdwg.mxu0
        %v977 = vmul.f32 %v975, 0.5
        %v978 = vmul.f32 %v975, 0.70710677
        %v979 = vmul.f32 %v978, %v978
        %v980 = vmin.f32 16.0, %v979
        %v981 = vmul.f32 %v980, 2.1237322e-06
        %v982 = vadd.f32 %v981, 0.00028619796
        %v983 = vmul.f32 %v980, %v982
        %v984 = vadd.f32 %v983, 0.0036580483
        %v985 = vmul.f32 %v980, %v984
        %v986 = vadd.f32 %v985, 0.05243302
        %v987 = vmul.f32 %v980, %v986
        %v988 = vadd.f32 %v987, 0.18741608
        %v989 = vmul.f32 %v980, %v988
        %v990 = vadd.f32 %v989, 1.1283791
        %v991 = vmul.f32 %v978, %v990
        %v992 = vmul.f32 %v980, 3.8918573e-05
        %v993 = vadd.f32 %v992, 0.001143296
        %v994 = vmul.f32 %v980, %v993
        %v995 = vadd.f32 %v994, 0.014752088
        %v996 = vmul.f32 %v980, %v995
        %v997 = vadd.f32 %v996, 0.112945676
        %v998 = vmul.f32 %v980, %v997
        %v999 = vadd.f32 %v998, 0.4994258
        %v1000 = vmul.f32 %v980, %v999
        %v1001 = vadd.f32 %v1000, 1.0
        %v1002 = vrcp.pop %v1001
        %v1003 = vmul.f32 %v1001, %v1002
        %v1004 = vsub.f32 1.0, %v1003
        %v1005 = vmul.f32 %v1002, %v1004
        %v1006 = vadd.f32 %v1002, %v1005
        %vm1007 = vweird.f32 %v1001
        %vm1008 = vweird.f32 %v1002
        %vm1009 = vmor %vm1007, %vm1008
        %v1010 = vsel %vm1009, %v1002, %v1006
        %v1011 = vand.u32 2147483647, %v1001
        %vm1012 = vcmp.eq.f32.partialorder %v1011, 8.507059e+37
        %v1013 = vand.u32 %v1001, 2147483648
        %v1014 = vor.u32 1.1754944e-38, %v1013
        %v1015 = vsel %vm1012, %v1014, %v1010
        %v1016 = vmul.f32 %v991, %v1015
        %v1017 = vmin.f32 %v1016, 1.0
        %v1018 = vmax.f32 %v1017, -1.0
        %v1019 = vadd.f32 %v1018, 1.0
        %v1020 = vmul.f32 %v977, %v1019
        %s1021 = scalar_lea.vmem %s4, 2
        %v1022 = vld [vmem:[%s1021] sm:$0x1]
        %v1024 = vperm.slane %v1022, 0
        %v1027 = vsel %vm407, %v1020, 0
        %v1030 = vsel %vm407, %v937, 0
        %v1033 = vsel %vm407, %v938, 0
        %v1036 = vsel %vm407, %v939, 0
        %v1039 = vsel %vm407, %v940, 0
        %v1042 = vsel %vm407, %v941, 0
        %v1045 = vsel %vm407, %v942, 0
        %v1048 = vsel %vm407, %v943, 0
        %v1051 = vsel %vm407, %v944, 0
        %1053 = vmatpush.xpose.msra.mxu0 0.0
        %1054 = vmatpush.xpose.msra.mxu0 0.0
        %1055 = vmatpush.xpose.msra.mxu0 0.0
        %1056 = vmatpush.xpose.msra.mxu0 0.0
        %1057 = vmatpush.xpose.msra.mxu0 0.0
        %1058 = vmatpush.xpose.msra.mxu0 0.0
        %1059 = vmatpush.xpose.msra.mxu0 0.0
        %1060 = vmatpush.xpose.msra.mxu0 0.0
        %1061 = vmatpush.xpose.msra.mxu0 %v1051
        %1062 = vmatpush.xpose.msra.mxu0 %v1048
        %1063 = vmatpush.xpose.msra.mxu0 %v1045
        %1064 = vmatpush.xpose.msra.mxu0 %v1042
        %1065 = vmatpush.xpose.msra.mxu0 %v1039
        %1066 = vmatpush.xpose.msra.mxu0 %v1036
        %1067 = vmatpush.xpose.msra.mxu0 %v1033
        %1068 = vmatpush.xpose.msra.mxu0 %v1030
        %1069 = vmatmul.f32.gmra.mxu0 %v1027
        %v1070 = vpop.f32.mrf.mxu0
        %v1071 = vadd.f32 %v1024, %v1070
        %1072 = vdwg.mxu0
        %s1073 = scalar_lea.vmem %s5, 16
        %v1074 = vld [vmem:[%s1073] sm:$0xff]
        %s1075 = scalar_lea.vmem %s7, 128
        %v1076 = vld [vmem:[%s1075] sm:$0xff]
        %v1077 = vld [vmem:[%s1075 + $0x8] sm:$0xff]
        %v1078 = vld [vmem:[%s1075 + $0x10] sm:$0xff]
        %v1079 = vld [vmem:[%s1075 + $0x18] sm:$0xff]
        %v1080 = vld [vmem:[%s1075 + $0x20] sm:$0xff]
        %v1081 = vld [vmem:[%s1075 + $0x28] sm:$0xff]
        %v1082 = vld [vmem:[%s1075 + $0x30] sm:$0xff]
        %v1083 = vld [vmem:[%s1075 + $0x38] sm:$0xff]
        %s1084 = scalar_lea.vmem %s6, 2
        %v1085 = vld [vmem:[%s1084] sm:$0x1]
        %v1087 = vperm.slane %v1085, 0
        %v1090 = vsel %vm407, %v1074, 0
        %1092 = vmatpush.xpose.msra.mxu0 0.0
        %1093 = vmatpush.xpose.msra.mxu0 0.0
        %1094 = vmatpush.xpose.msra.mxu0 0.0
        %1095 = vmatpush.xpose.msra.mxu0 0.0
        %1096 = vmatpush.xpose.msra.mxu0 0.0
        %1097 = vmatpush.xpose.msra.mxu0 0.0
        %1098 = vmatpush.xpose.msra.mxu0 0.0
        %1099 = vmatpush.xpose.msra.mxu0 0.0
        %1100 = vmatpush.xpose.msra.mxu0 0.0
        %1101 = vmatpush.xpose.msra.mxu0 0.0
        %1102 = vmatpush.xpose.msra.mxu0 0.0
        %1103 = vmatpush.xpose.msra.mxu0 0.0
        %1104 = vmatpush.xpose.msra.mxu0 0.0
        %1105 = vmatpush.xpose.msra.mxu0 0.0
        %1106 = vmatpush.xpose.msra.mxu0 0.0
        %1107 = vmatpush.xpose.msra.mxu0 %v1090
        %1108 = vmatmul.f32.gmra.mxu0 %v952
        %v1109 = vpop.f32.mrf.mxu0
        %v1110 = vadd.f32 %v1087, %v1109
        %1111 = vdwg.mxu0
        %v1112 = vmul.f32 %v1110, 0.5
        %v1113 = vmul.f32 %v1110, 0.70710677
        %v1114 = vmul.f32 %v1113, %v1113
        %v1115 = vmin.f32 16.0, %v1114
        %v1116 = vmul.f32 %v1115, 2.1237322e-06
        %v1117 = vadd.f32 %v1116, 0.00028619796
        %v1118 = vmul.f32 %v1115, %v1117
        %v1119 = vadd.f32 %v1118, 0.0036580483
        %v1120 = vmul.f32 %v1115, %v1119
        %v1121 = vadd.f32 %v1120, 0.05243302
        %v1122 = vmul.f32 %v1115, %v1121
        %v1123 = vadd.f32 %v1122, 0.18741608
        %v1124 = vmul.f32 %v1115, %v1123
        %v1125 = vadd.f32 %v1124, 1.1283791
        %v1126 = vmul.f32 %v1113, %v1125
        %v1127 = vmul.f32 %v1115, 3.8918573e-05
        %v1128 = vadd.f32 %v1127, 0.001143296
        %v1129 = vmul.f32 %v1115, %v1128
        %v1130 = vadd.f32 %v1129, 0.014752088
        %v1131 = vmul.f32 %v1115, %v1130
        %v1132 = vadd.f32 %v1131, 0.112945676
        %v1133 = vmul.f32 %v1115, %v1132
        %v1134 = vadd.f32 %v1133, 0.4994258
        %v1135 = vmul.f32 %v1115, %v1134
        %v1136 = vadd.f32 %v1135, 1.0
        %v1137 = vrcp.pop %v1136
        %v1138 = vmul.f32 %v1136, %v1137
        %v1139 = vsub.f32 1.0, %v1138
        %v1140 = vmul.f32 %v1137, %v1139
        %v1141 = vadd.f32 %v1137, %v1140
        %vm1142 = vweird.f32 %v1136
        %vm1143 = vweird.f32 %v1137
        %vm1144 = vmor %vm1142, %vm1143
        %v1145 = vsel %vm1144, %v1137, %v1141
        %v1146 = vand.u32 2147483647, %v1136
        %vm1147 = vcmp.eq.f32.partialorder %v1146, 8.507059e+37
        %v1148 = vand.u32 %v1136, 2147483648
        %v1149 = vor.u32 1.1754944e-38, %v1148
        %v1150 = vsel %vm1147, %v1149, %v1145
        %v1151 = vmul.f32 %v1126, %v1150
        %v1152 = vmin.f32 %v1151, 1.0
        %v1153 = vmax.f32 %v1152, -1.0
        %v1154 = vadd.f32 %v1153, 1.0
        %v1155 = vmul.f32 %v1112, %v1154
        %s1156 = scalar_lea.vmem %s8, 2
        %v1157 = vld [vmem:[%s1156] sm:$0x1]
        %v1159 = vperm.slane %v1157, 0
        %v1162 = vsel %vm407, %v1155, 0
        %v1165 = vsel %vm407, %v1076, 0
        %v1168 = vsel %vm407, %v1077, 0
        %v1171 = vsel %vm407, %v1078, 0
        %v1174 = vsel %vm407, %v1079, 0
        %v1177 = vsel %vm407, %v1080, 0
        %v1180 = vsel %vm407, %v1081, 0
        %v1183 = vsel %vm407, %v1082, 0
        %v1186 = vsel %vm407, %v1083, 0
        %1188 = vmatpush.xpose.msra.mxu0 0.0
        %1189 = vmatpush.xpose.msra.mxu0 0.0
        %1190 = vmatpush.xpose.msra.mxu0 0.0
        %1191 = vmatpush.xpose.msra.mxu0 0.0
        %1192 = vmatpush.xpose.msra.mxu0 0.0
        %1193 = vmatpush.xpose.msra.mxu0 0.0
        %1194 = vmatpush.xpose.msra.mxu0 0.0
        %1195 = vmatpush.xpose.msra.mxu0 0.0
        %1196 = vmatpush.xpose.msra.mxu0 %v1186
        %1197 = vmatpush.xpose.msra.mxu0 %v1183
        %1198 = vmatpush.xpose.msra.mxu0 %v1180
        %1199 = vmatpush.xpose.msra.mxu0 %v1177
        %1200 = vmatpush.xpose.msra.mxu0 %v1174
        %1201 = vmatpush.xpose.msra.mxu0 %v1171
        %1202 = vmatpush.xpose.msra.mxu0 %v1168
        %1203 = vmatpush.xpose.msra.mxu0 %v1165
        %1204 = vmatmul.f32.gmra.mxu0 %v1162
        %v1205 = vpop.f32.mrf.mxu0
        %v1206 = vadd.f32 %v1159, %v1205
        %1207 = vdwg.mxu0
        %s1208 = scalar_lea.vmem %s1, 24
        %v1209 = vld [vmem:[%s1208] sm:$0xff]
        %s1210 = scalar_lea.vmem %s3, 192
        %v1211 = vld [vmem:[%s1210] sm:$0xff]
        %v1212 = vld [vmem:[%s1210 + $0x8] sm:$0xff]
        %v1213 = vld [vmem:[%s1210 + $0x10] sm:$0xff]
        %v1214 = vld [vmem:[%s1210 + $0x18] sm:$0xff]
        %v1215 = vld [vmem:[%s1210 + $0x20] sm:$0xff]
        %v1216 = vld [vmem:[%s1210 + $0x28] sm:$0xff]
        %v1217 = vld [vmem:[%s1210 + $0x30] sm:$0xff]
        %v1218 = vld [vmem:[%s1210 + $0x38] sm:$0xff]
        %s1219 = scalar_lea.vmem %s2, 3
        %v1220 = vld [vmem:[%s1219] sm:$0x1]
        %v1222 = vperm.slane %v1220, 0
        %1224 = vrot.lane.b32.xlu0 %v393, 104
        %v1225 = vpop.permute.xlu0 %1224
        %v1226 = vsel %vm407, %v1225, 0
        %v1229 = vsel %vm407, %v1209, 0
        %1231 = vmatpush.xpose.msra.mxu0 0.0
        %1232 = vmatpush.xpose.msra.mxu0 0.0
        %1233 = vmatpush.xpose.msra.mxu0 0.0
        %1234 = vmatpush.xpose.msra.mxu0 0.0
        %1235 = vmatpush.xpose.msra.mxu0 0.0
        %1236 = vmatpush.xpose.msra.mxu0 0.0
        %1237 = vmatpush.xpose.msra.mxu0 0.0
        %1238 = vmatpush.xpose.msra.mxu0 0.0
        %1239 = vmatpush.xpose.msra.mxu0 0.0
        %1240 = vmatpush.xpose.msra.mxu0 0.0
        %1241 = vmatpush.xpose.msra.mxu0 0.0
        %1242 = vmatpush.xpose.msra.mxu0 0.0
        %1243 = vmatpush.xpose.msra.mxu0 0.0
        %1244 = vmatpush.xpose.msra.mxu0 0.0
        %1245 = vmatpush.xpose.msra.mxu0 0.0
        %1246 = vmatpush.xpose.msra.mxu0 %v1229
        %1247 = vmatmul.f32.gmra.mxu0 %v1226
        %v1248 = vpop.f32.mrf.mxu0
        %v1249 = vadd.f32 %v1222, %v1248
        %1250 = vdwg.mxu0
        %v1251 = vmul.f32 %v1249, 0.5
        %v1252 = vmul.f32 %v1249, 0.70710677
        %v1253 = vmul.f32 %v1252, %v1252
        %v1254 = vmin.f32 16.0, %v1253
        %v1255 = vmul.f32 %v1254, 2.1237322e-06
        %v1256 = vadd.f32 %v1255, 0.00028619796
        %v1257 = vmul.f32 %v1254, %v1256
        %v1258 = vadd.f32 %v1257, 0.0036580483
        %v1259 = vmul.f32 %v1254, %v1258
        %v1260 = vadd.f32 %v1259, 0.05243302
        %v1261 = vmul.f32 %v1254, %v1260
        %v1262 = vadd.f32 %v1261, 0.18741608
        %v1263 = vmul.f32 %v1254, %v1262
        %v1264 = vadd.f32 %v1263, 1.1283791
        %v1265 = vmul.f32 %v1252, %v1264
        %v1266 = vmul.f32 %v1254, 3.8918573e-05
        %v1267 = vadd.f32 %v1266, 0.001143296
        %v1268 = vmul.f32 %v1254, %v1267
        %v1269 = vadd.f32 %v1268, 0.014752088
        %v1270 = vmul.f32 %v1254, %v1269
        %v1271 = vadd.f32 %v1270, 0.112945676
        %v1272 = vmul.f32 %v1254, %v1271
        %v1273 = vadd.f32 %v1272, 0.4994258
        %v1274 = vmul.f32 %v1254, %v1273
        %v1275 = vadd.f32 %v1274, 1.0
        %v1276 = vrcp.pop %v1275
        %v1277 = vmul.f32 %v1275, %v1276
        %v1278 = vsub.f32 1.0, %v1277
        %v1279 = vmul.f32 %v1276, %v1278
        %v1280 = vadd.f32 %v1276, %v1279
        %vm1281 = vweird.f32 %v1275
        %vm1282 = vweird.f32 %v1276
        %vm1283 = vmor %vm1281, %vm1282
        %v1284 = vsel %vm1283, %v1276, %v1280
        %v1285 = vand.u32 2147483647, %v1275
        %vm1286 = vcmp.eq.f32.partialorder %v1285, 8.507059e+37
        %v1287 = vand.u32 %v1275, 2147483648
        %v1288 = vor.u32 1.1754944e-38, %v1287
        %v1289 = vsel %vm1286, %v1288, %v1284
        %v1290 = vmul.f32 %v1265, %v1289
        %v1291 = vmin.f32 %v1290, 1.0
        %v1292 = vmax.f32 %v1291, -1.0
        %v1293 = vadd.f32 %v1292, 1.0
        %v1294 = vmul.f32 %v1251, %v1293
        %s1295 = scalar_lea.vmem %s4, 3
        %v1296 = vld [vmem:[%s1295] sm:$0x1]
        %v1298 = vperm.slane %v1296, 0
        %v1301 = vsel %vm407, %v1294, 0
        %v1304 = vsel %vm407, %v1211, 0
        %v1307 = vsel %vm407, %v1212, 0
        %v1310 = vsel %vm407, %v1213, 0
        %v1313 = vsel %vm407, %v1214, 0
        %v1316 = vsel %vm407, %v1215, 0
        %v1319 = vsel %vm407, %v1216, 0
        %v1322 = vsel %vm407, %v1217, 0
        %v1325 = vsel %vm407, %v1218, 0
        %1327 = vmatpush.xpose.msra.mxu0 0.0
        %1328 = vmatpush.xpose.msra.mxu0 0.0
        %1329 = vmatpush.xpose.msra.mxu0 0.0
        %1330 = vmatpush.xpose.msra.mxu0 0.0
        %1331 = vmatpush.xpose.msra.mxu0 0.0
        %1332 = vmatpush.xpose.msra.mxu0 0.0
        %1333 = vmatpush.xpose.msra.mxu0 0.0
        %1334 = vmatpush.xpose.msra.mxu0 0.0
        %1335 = vmatpush.xpose.msra.mxu0 %v1325
        %1336 = vmatpush.xpose.msra.mxu0 %v1322
        %1337 = vmatpush.xpose.msra.mxu0 %v1319
        %1338 = vmatpush.xpose.msra.mxu0 %v1316
        %1339 = vmatpush.xpose.msra.mxu0 %v1313
        %1340 = vmatpush.xpose.msra.mxu0 %v1310
        %1341 = vmatpush.xpose.msra.mxu0 %v1307
        %1342 = vmatpush.xpose.msra.mxu0 %v1304
        %1343 = vmatmul.f32.gmra.mxu0 %v1301
        %v1344 = vpop.f32.mrf.mxu0
        %v1345 = vadd.f32 %v1298, %v1344
        %1346 = vdwg.mxu0
        %s1347 = scalar_lea.vmem %s5, 24
        %v1348 = vld [vmem:[%s1347] sm:$0xff]
        %s1349 = scalar_lea.vmem %s7, 192
        %v1350 = vld [vmem:[%s1349] sm:$0xff]
        %v1351 = vld [vmem:[%s1349 + $0x8] sm:$0xff]
        %v1352 = vld [vmem:[%s1349 + $0x10] sm:$0xff]
        %v1353 = vld [vmem:[%s1349 + $0x18] sm:$0xff]
        %v1354 = vld [vmem:[%s1349 + $0x20] sm:$0xff]
        %v1355 = vld [vmem:[%s1349 + $0x28] sm:$0xff]
        %v1356 = vld [vmem:[%s1349 + $0x30] sm:$0xff]
        %v1357 = vld [vmem:[%s1349 + $0x38] sm:$0xff]
        %s1358 = scalar_lea.vmem %s6, 3
        %v1359 = vld [vmem:[%s1358] sm:$0x1]
        %v1361 = vperm.slane %v1359, 0
        %v1364 = vsel %vm407, %v1348, 0
        %1366 = vmatpush.xpose.msra.mxu0 0.0
        %1367 = vmatpush.xpose.msra.mxu0 0.0
        %1368 = vmatpush.xpose.msra.mxu0 0.0
        %1369 = vmatpush.xpose.msra.mxu0 0.0
        %1370 = vmatpush.xpose.msra.mxu0 0.0
        %1371 = vmatpush.xpose.msra.mxu0 0.0
        %1372 = vmatpush.xpose.msra.mxu0 0.0
        %1373 = vmatpush.xpose.msra.mxu0 0.0
        %1374 = vmatpush.xpose.msra.mxu0 0.0
        %1375 = vmatpush.xpose.msra.mxu0 0.0
        %1376 = vmatpush.xpose.msra.mxu0 0.0
        %1377 = vmatpush.xpose.msra.mxu0 0.0
        %1378 = vmatpush.xpose.msra.mxu0 0.0
        %1379 = vmatpush.xpose.msra.mxu0 0.0
        %1380 = vmatpush.xpose.msra.mxu0 0.0
        %1381 = vmatpush.xpose.msra.mxu0 %v1364
        %1382 = vmatmul.f32.gmra.mxu0 %v1226
        %v1383 = vpop.f32.mrf.mxu0
        %v1384 = vadd.f32 %v1361, %v1383
        %1385 = vdwg.mxu0
        %v1386 = vmul.f32 %v1384, 0.5
        %v1387 = vmul.f32 %v1384, 0.70710677
        %v1388 = vmul.f32 %v1387, %v1387
        %v1389 = vmin.f32 16.0, %v1388
        %v1390 = vmul.f32 %v1389, 2.1237322e-06
        %v1391 = vadd.f32 %v1390, 0.00028619796
        %v1392 = vmul.f32 %v1389, %v1391
        %v1393 = vadd.f32 %v1392, 0.0036580483
        %v1394 = vmul.f32 %v1389, %v1393
        %v1395 = vadd.f32 %v1394, 0.05243302
        %v1396 = vmul.f32 %v1389, %v1395
        %v1397 = vadd.f32 %v1396, 0.18741608
        %v1398 = vmul.f32 %v1389, %v1397
        %v1399 = vadd.f32 %v1398, 1.1283791
        %v1400 = vmul.f32 %v1387, %v1399
        %v1401 = vmul.f32 %v1389, 3.8918573e-05
        %v1402 = vadd.f32 %v1401, 0.001143296
        %v1403 = vmul.f32 %v1389, %v1402
        %v1404 = vadd.f32 %v1403, 0.014752088
        %v1405 = vmul.f32 %v1389, %v1404
        %v1406 = vadd.f32 %v1405, 0.112945676
        %v1407 = vmul.f32 %v1389, %v1406
        %v1408 = vadd.f32 %v1407, 0.4994258
        %v1409 = vmul.f32 %v1389, %v1408
        %v1410 = vadd.f32 %v1409, 1.0
        %v1411 = vrcp.pop %v1410
        %v1412 = vmul.f32 %v1410, %v1411
        %v1413 = vsub.f32 1.0, %v1412
        %v1414 = vmul.f32 %v1411, %v1413
        %v1415 = vadd.f32 %v1411, %v1414
        %vm1416 = vweird.f32 %v1410
        %vm1417 = vweird.f32 %v1411
        %vm1418 = vmor %vm1416, %vm1417
        %v1419 = vsel %vm1418, %v1411, %v1415
        %v1420 = vand.u32 2147483647, %v1410
        %vm1421 = vcmp.eq.f32.partialorder %v1420, 8.507059e+37
        %v1422 = vand.u32 %v1410, 2147483648
        %v1423 = vor.u32 1.1754944e-38, %v1422
        %v1424 = vsel %vm1421, %v1423, %v1419
        %v1425 = vmul.f32 %v1400, %v1424
        %v1426 = vmin.f32 %v1425, 1.0
        %v1427 = vmax.f32 %v1426, -1.0
        %v1428 = vadd.f32 %v1427, 1.0
        %v1429 = vmul.f32 %v1386, %v1428
        %s1430 = scalar_lea.vmem %s8, 3
        %v1431 = vld [vmem:[%s1430] sm:$0x1]
        %v1433 = vperm.slane %v1431, 0
        %v1436 = vsel %vm407, %v1429, 0
        %v1439 = vsel %vm407, %v1350, 0
        %v1442 = vsel %vm407, %v1351, 0
        %v1445 = vsel %vm407, %v1352, 0
        %v1448 = vsel %vm407, %v1353, 0
        %v1451 = vsel %vm407, %v1354, 0
        %v1454 = vsel %vm407, %v1355, 0
        %v1457 = vsel %vm407, %v1356, 0
        %v1460 = vsel %vm407, %v1357, 0
        %1462 = vmatpush.xpose.msra.mxu0 0.0
        %1463 = vmatpush.xpose.msra.mxu0 0.0
        %1464 = vmatpush.xpose.msra.mxu0 0.0
        %1465 = vmatpush.xpose.msra.mxu0 0.0
        %1466 = vmatpush.xpose.msra.mxu0 0.0
        %1467 = vmatpush.xpose.msra.mxu0 0.0
        %1468 = vmatpush.xpose.msra.mxu0 0.0
        %1469 = vmatpush.xpose.msra.mxu0 0.0
        %1470 = vmatpush.xpose.msra.mxu0 %v1460
        %1471 = vmatpush.xpose.msra.mxu0 %v1457
        %1472 = vmatpush.xpose.msra.mxu0 %v1454
        %1473 = vmatpush.xpose.msra.mxu0 %v1451
        %1474 = vmatpush.xpose.msra.mxu0 %v1448
        %1475 = vmatpush.xpose.msra.mxu0 %v1445
        %1476 = vmatpush.xpose.msra.mxu0 %v1442
        %1477 = vmatpush.xpose.msra.mxu0 %v1439
        %1478 = vmatmul.f32.gmra.mxu0 %v1436
        %v1479 = vpop.f32.mrf.mxu0
        %v1480 = vadd.f32 %v1433, %v1479
        %1481 = vdwg.mxu0
        %1483 = vrot.lane.b32.xlu0 %v797, 64
        %v1484 = vpop.permute.xlu0 %1483
        %1487 = vrot.lane.b32.xlu0 %v1345, 64
        %v1488 = vpop.permute.xlu0 %1487
        %vm1490 = vcmask 523264
        %v1491 = vsel %vm1490, %v527, %v1484
        %v1492 = vsel %vm1490, %v1071, %v1488
        %1493 = vst [vmem:[%s378] sm:$0xff] %v1491
        %1494 = vst [vmem:[%s378 + $0x8] sm:$0xff] %v1492
        %1496 = vrot.lane.b32.xlu0 %v932, 64
        %v1497 = vpop.permute.xlu0 %1496
        %1500 = vrot.lane.b32.xlu0 %v1480, 64
        %v1501 = vpop.permute.xlu0 %1500
        %v1503 = vsel %vm1490, %v658, %v1497
        %v1504 = vsel %vm1490, %v1206, %v1501
        %1505 = vst [vmem:[%s385] sm:$0xff] %v1503
        %1506 = vst [vmem:[%s385 + $0x8] sm:$0xff] %v1504
        %s1507 = sand.u32 %s246, 1
        %s1508 = scalar_lea.sflag [#allocation3], %s1507
        %s1509 = sand.u32 %s246, 1
        %s1510 = smul.addr %s1509, 16
        %s1511 = scalar_lea.vmem [#allocation2], %s1510
        %s1512 = sand.u32 %s274, 1
        %s1513 = scalar_lea.sflag [#allocation5], %s1512
        %s1514 = sand.u32 %s274, 1
        %s1515 = smul.addr %s1514, 16
        %s1516 = scalar_lea.vmem [#allocation4], %s1515
        // Predicated region
        $region57: #{tpu_custom_call.1} parent=55 // pred_check
          %p1517 = pneg %p256
        $region58: #{tpu_custom_call.1} parent=55 // pred_check_branch
          %1519 = sbr.rel (%p1517) target = $region60
        $region59: #{tpu_custom_call.1} parent=55 // pred_region
          %1521 = vsyncadd %s1508, 0
          %s1522 = smul.addr %s33, 2
          %s1523 = smul.addr %s32, 2
          %s1524 = sadd.s32 %s1522, %s1523
          %s1525 = smul.addr %s1524, 8
          %s1526 = scalar_lea.hbm %s9, %s1525
          %s1528 = sshll.u32 %s1511, 4
          %s1529 = int_to_ptr.vmem [resolvable:$true] %s1528
          %s1530 = sshll.u32 %s1526, 4
          %s1531 = int_to_ptr.hbm [resolvable:$true] %s1530
          %1533 = dma.vmem_to_hbm [thread:$0]  %s1529, 256, %s1531, %s1508
        $region60: #{tpu_custom_call.1} parent=55 // pred_fallthru
          _
        // Predicated region
        $region61: #{tpu_custom_call.1} parent=55 // pred_check
          %p1534 = pneg %p284
        $region62: #{tpu_custom_call.1} parent=55 // pred_check_branch
          %1536 = sbr.rel (%p1534) target = $region64
        $region63: #{tpu_custom_call.1} parent=55 // pred_region
          %1538 = vsyncadd %s1513, 0
          %s1539 = smul.addr %s33, 2
          %s1540 = smul.addr %s32, 2
          %s1541 = sadd.s32 %s1539, %s1540
          %s1542 = smul.addr %s1541, 8
          %s1543 = scalar_lea.hbm %s10, %s1542
          %s1545 = sshll.u32 %s1516, 4
          %s1546 = int_to_ptr.vmem [resolvable:$true] %s1545
          %s1547 = sshll.u32 %s1543, 4
          %s1548 = int_to_ptr.hbm [resolvable:$true] %s1547
          %1550 = dma.vmem_to_hbm [thread:$0]  %s1546, 256, %s1548, %s1513
        $region64: #{tpu_custom_call.1} parent=55 // pred_fallthru
          _
      $region56: #{tpu_custom_call.1} parent=5 // pred_fallthru
        _
      %p1551 = scmp.le.s32.totalorder 2, %s23
      // Predicated region
      $region65: #{tpu_custom_call.1} parent=5 // pred_check
        %p1552 = pneg %p1551
      $region66: #{tpu_custom_call.1} parent=5 // pred_check_branch
        %1554 = sbr.rel (%p1552) target = $region68
      $region67: #{tpu_custom_call.1} parent=5 // pred_region
        %s1555 = ssub.s32 %s23, 2
        // Predicated region
        $region69: #{tpu_custom_call.1} parent=67 // pred_check
          %p1556 = pneg %p262
        $region70: #{tpu_custom_call.1} parent=67 // pred_check_branch
          %1558 = sbr.rel (%p1556) target = $region72
        $region71: #{tpu_custom_call.1} parent=67 // pred_region
          %s1559 = sand.u32 %s247, 1
          %s1560 = scalar_lea.sflag [#allocation3], %s1559
          %s1561 = sand.u32 %s247, 1
          %s1562 = smul.addr %s1561, 16
          %s1563 = scalar_lea.vmem [#allocation2], %s1562
          %1565 = dma.done %s1560, 256
        $region72: #{tpu_custom_call.1} parent=67 // pred_fallthru
          _
        // Predicated region
        $region73: #{tpu_custom_call.1} parent=67 // pred_check
          %p1566 = pneg %p290
        $region74: #{tpu_custom_call.1} parent=67 // pred_check_branch
          %1568 = sbr.rel (%p1566) target = $region76
        $region75: #{tpu_custom_call.1} parent=67 // pred_region
          %s1569 = sand.u32 %s275, 1
          %s1570 = scalar_lea.sflag [#allocation5], %s1569
          %s1571 = sand.u32 %s275, 1
          %s1572 = smul.addr %s1571, 16
          %s1573 = scalar_lea.vmem [#allocation4], %s1572
          %1575 = dma.done %s1570, 256
        $region76: #{tpu_custom_call.1} parent=67 // pred_fallthru
          _
      $region68: #{tpu_custom_call.1} parent=5 // pred_fallthru
        _
    $region6: #{tpu_custom_call.1} parent=1 // loop_footer
      %s27 = sadd.s32 1, %s23
    $region7: #{tpu_custom_call.1} parent=1 // loop_footer_branch
      %22 = sbr.rel target = $region3
    $region8: #{tpu_custom_call.1} parent=1 // loop_exit
      _
    %1576 = vsyncpa [#allocation3], 1
    %s1577 = scalar_lea.sflag [#allocation3], 1
    %1578 = vsyncpa %s1577, 1
    %1579 = vsyncpa [#allocation5], 1
    %s1580 = scalar_lea.sflag [#allocation5], 1
    %1581 = vsyncpa %s1580, 1

</llo_original>
